<compile_context>
chip_gen: v7x
topology: tpu7x:2x2x1
jax: 0.10.0
libtpu: 0.0.40
codegen_flags: <defaults>
</compile_context>

<pallas_src>
import functools

import jax
import jax.numpy as jnp
from jax.experimental import pallas as pl
from jax.experimental.pallas import tpu as pltpu

LATENT_DIM = 9
_LANE = 128
_SUBLANE = 16  # bf16-safe sublane multiple (also covers f32's 8)


def _round_up(n, m):
    return (n + m - 1) // m * m


def _pad2d(a, rows, cols):
    pr, pc = rows - a.shape[0], cols - a.shape[1]
    if pr == 0 and pc == 0:
        return a
    return jnp.pad(a, ((0, pr), (0, pc)))


def _layer_dims(input_dim):
    in_pad = _round_up(input_dim, _LANE)
    lat_pad = _round_up(LATENT_DIM, _LANE)
    h64 = _round_up(64, _LANE)
    enc = [in_pad, 256, 128, h64, lat_pad]
    dec = [lat_pad, h64, 128, 256, in_pad]
    return enc, dec


def _autoencoder_kernel(
    x_ref,
    we1_ref, be1_ref, we2_ref, be2_ref, we3_ref, be3_ref, we4_ref, be4_ref,
    wd1_ref, bd1_ref, wd2_ref, bd2_ref, wd3_ref, bd3_ref, wd4_ref, bd4_ref,
    recon_ref, latent_ref,
    *, compute_dtype,
):
    """Fused encoder+decoder chain for one batch tile; all matmuls on the MXU.

    Matmul operands are compute_dtype (bf16 by default); accumulation is always
    f32 (preferred_element_type); bias add and ReLU stay in f32.
    """
    x = x_ref[...]

    def dense(h, w_ref, b_ref, relu):
        y = jnp.dot(h.astype(compute_dtype), w_ref[...],
                    preferred_element_type=jnp.float32)
        y = y + b_ref[...]
        return jnp.maximum(y, 0.0) if relu else y

    # Encoder: in_pad -> 256 -> 128 -> 128 (=padded 64) -> 128 (=padded latent 9)
    h = dense(x, we1_ref, be1_ref, relu=True)
    h = dense(h, we2_ref, be2_ref, relu=True)
    h = dense(h, we3_ref, be3_ref, relu=True)
    latent = dense(h, we4_ref, be4_ref, relu=False)
    # Store latent right away: shorter live range (less vreg/spill pressure) and
    # its output DMA overlaps the decoder MXU work.
    latent_ref[...] = latent.astype(latent_ref.dtype)

    # Decoder: 128 -> 128 (=padded 64) -> 128 -> 256 -> in_pad
    h = dense(latent, wd1_ref, bd1_ref, relu=True)
    h = dense(h, wd2_ref, bd2_ref, relu=True)
    h = dense(h, wd3_ref, bd3_ref, relu=True)
    recon_ref[...] = dense(h, wd4_ref, bd4_ref, relu=False).astype(recon_ref.dtype)


def prepare_params(params, input_dim, *, compute_dtype=jnp.bfloat16):
    """Pad + cast weights ONCE (hoisted out of the per-call forward path).

    Weights [in, out] are zero-padded so every layer width is a multiple of 128
    (lane-dense loads, full MXU K/N) and cast to compute_dtype; biases stay f32.
    Zero padding is exact: padded rows/cols/bias lanes are 0, so padded
    activation lanes remain exactly 0 through the linear + ReLU chain.
    """
    enc_dims, dec_dims = _layer_dims(input_dim)
    flat = []
    for wpre, bpre, dims in (("we", "be", enc_dims), ("wd", "bd", dec_dims)):
        for layer in range(4):
            w = params[f"{wpre}{layer + 1}"]
            b = params[f"{bpre}{layer + 1}"]
            flat.append(_pad2d(w, dims[layer], dims[layer + 1]).astype(compute_dtype))
            flat.append(_pad2d(b, 1, dims[layer + 1]).astype(jnp.float32))
    return tuple(flat)


def _pick_block_b(B, block_b):
    """Clamp the batch tile: multiple of 16, and >=2 grid steps when B permits."""
    block_b = max(_SUBLANE, (block_b // _SUBLANE) * _SUBLANE)
    if _round_up(B, _SUBLANE) <= block_b:
        if B >= 2 * _LANE:
            # Split into >= 2 tiles so the 'parallel' batch axis can shard
            # across both v7x TensorCores.
            block_b = _round_up(pl.cdiv(B, 2), _LANE)
        else:
            block_b = _round_up(B, _SUBLANE)
    return block_b


def weather_autoencoder_forward(x, prepared_params, *, block_b=512,
                                out_dtype=jnp.float32, trim_outputs=True):
    """Autoencoder forward pass as a single fused Pallas kernel.

    x:                [B, input_dim] float32
    prepared_params:  output of prepare_params() (padded, pre-cast)
    returns (recon [B, input_dim], latent [B, LATENT_DIM]) in out_dtype
    """
    B, input_dim = x.shape
    enc_dims, _ = _layer_dims(input_dim)
    in_pad, lat_pad = enc_dims[0], enc_dims[-1]
    compute_dtype = prepared_params[0].dtype

    block_b = _pick_block_b(B, block_b)
    grid = (pl.cdiv(B, block_b),)

    # Only the lane (feature) axis is padded. The ragged last batch block is
    # handled by Pallas: OOB rows read garbage inside the kernel but their
    # output rows are write-masked; rows are independent so this is exact.
    x_p = _pad2d(x, B, in_pad).astype(compute_dtype)

    in_specs = [pl.BlockSpec((block_b, in_pad), lambda i: (i, 0))]
    for p in prepared_params:
        # Constant index_map -> weights/biases stay resident in VMEM across the
        # whole batch grid (no re-DMA per step).
        in_specs.append(pl.BlockSpec(p.shape, lambda i: (0, 0)))

    out_shape = (
        jax.ShapeDtypeStruct((B, in_pad), out_dtype),
        jax.ShapeDtypeStruct((B, lat_pad), out_dtype),
    )
    out_specs = (
        pl.BlockSpec((block_b, in_pad), lambda i: (i, 0)),
        pl.BlockSpec((block_b, lat_pad), lambda i: (i, 0)),
    )

    grid_spec = pltpu.PrefetchScalarGridSpec(
        num_scalar_prefetch=0,
        grid=grid,
        in_specs=in_specs,
        out_specs=out_specs,
    )

    recon_p, latent_p = pl.pallas_call(
        functools.partial(_autoencoder_kernel, compute_dtype=compute_dtype),
        out_shape=out_shape,
        grid_spec=grid_spec,
        compiler_params=pltpu.CompilerParams(
            dimension_semantics=("parallel",),
            # Explicit budget: comfortably below v7x's 64 MiB physical VMEM,
            # well above what block_b<=1024 needs (weights ~0.5 MiB resident).
            vmem_limit_bytes=48 * 1024 * 1024,
        ),
    )(x_p, *prepared_params)

    if trim_outputs:
        # Static column slice back to logical widths (padding lanes are exact 0).
        return recon_p[:, :input_dim], latent_p[:, :LATENT_DIM]
    return recon_p, latent_p


def init_params(key, input_dim, latent_dim=LATENT_DIM):
    """Deterministic synthetic parameters (shapes mirror the PyTorch module)."""
    dims_enc = [input_dim, 256, 128, 64, latent_dim]
    dims_dec = [latent_dim, 64, 128, 256, input_dim]
    params = {}
    keys = jax.random.split(key, 16)
    k = 0
    for prefix, dims in (("e", dims_enc), ("d", dims_dec)):
        for layer in range(4):
            fan_in, fan_out = dims[layer], dims[layer + 1]
            scale = 1.0 / jnp.sqrt(jnp.float32(fan_in))
            w = jax.random.uniform(
                keys[k], (fan_in, fan_out), jnp.float32, -scale, scale)
            b = jax.random.uniform(
                keys[k + 1], (1, fan_out), jnp.float32, -scale, scale)
            params[f"w{prefix}{layer + 1}"] = w
            params[f"b{prefix}{layer + 1}"] = b
            k += 2
    return params


def reference_forward(x, params):
    """Plain-JAX reference for correctness checking."""
    h = x
    for name in ("e1", "e2", "e3"):
        h = jnp.maximum(h @ params[f"w{name}"] + params[f"b{name}"], 0.0)
    latent = h @ params["we4"] + params["be4"]
    h = latent
    for name in ("d1", "d2", "d3"):
        h = jnp.maximum(h @ params[f"w{name}"] + params[f"b{name}"], 0.0)
    recon = h @ params["wd4"] + params["bd4"]
    return recon, latent


if __name__ == "__main__":
    INPUT_DIM = 32

    key = jax.random.PRNGKey(0)
    key_params, key_x1, key_x2 = jax.random.split(key, 3)
    params = init_params(key_params, INPUT_DIM)

    fwd = jax.jit(functools.partial(weather_autoencoder_forward, block_b=512))

    # --- f32 matmul-operand path, small batch (near-exact vs reference) ---
    B1 = 16
    x1 = jax.random.normal(key_x1, (B1, INPUT_DIM), jnp.float32)
    recon_ref1, latent_ref1 = reference_forward(x1, params)
    prep_f32 = prepare_params(params, INPUT_DIM, compute_dtype=jnp.float32)
    recon1, latent1 = fwd(x1, prep_f32)
    jax.block_until_ready((recon1, latent1))
    assert recon1.shape == (B1, INPUT_DIM)
    assert latent1.shape == (B1, LATENT_DIM)
    assert jnp.allclose(recon1, recon_ref1, atol=1e-5, rtol=1e-5)
    assert jnp.allclose(latent1, latent_ref1, atol=1e-5, rtol=1e-5)

    # --- default bf16 matmul-operand path (MXU peak on all gens), ragged batch
    #     with >=2 grid steps so the 'parallel' axis exercises multi-tile code ---
    B2 = 300
    x2 = jax.random.normal(key_x2, (B2, INPUT_DIM), jnp.float32)
    recon_ref2, latent_ref2 = reference_forward(x2, params)
    prep_bf16 = prepare_params(params, INPUT_DIM)  # bf16 operands by default
    recon2, latent2 = fwd(x2, prep_bf16)
    jax.block_until_ready((recon2, latent2))
    assert recon2.shape == (B2, INPUT_DIM)
    assert latent2.shape == (B2, LATENT_DIM)
    assert jnp.allclose(recon2, recon_ref2, atol=5e-2, rtol=5e-2)
    assert jnp.allclose(latent2, latent_ref2, atol=5e-2, rtol=5e-2)

    print("KERNEL_OK")
</pallas_src>

<mosaic_0001>
module attributes {stable_mosaic.version = 11 : i64} {
  func.func @_autoencoder_kernel(%arg0: i32, %arg1: memref<16x128xf32, #tpu.memory_space<vmem>>, %arg2: memref<128x256xf32, #tpu.memory_space<vmem>>, %arg3: memref<1x256xf32, #tpu.memory_space<vmem>>, %arg4: memref<256x128xf32, #tpu.memory_space<vmem>>, %arg5: memref<1x128xf32, #tpu.memory_space<vmem>>, %arg6: memref<128x128xf32, #tpu.memory_space<vmem>>, %arg7: memref<1x128xf32, #tpu.memory_space<vmem>>, %arg8: memref<128x128xf32, #tpu.memory_space<vmem>>, %arg9: memref<1x128xf32, #tpu.memory_space<vmem>>, %arg10: memref<128x128xf32, #tpu.memory_space<vmem>>, %arg11: memref<1x128xf32, #tpu.memory_space<vmem>>, %arg12: memref<128x128xf32, #tpu.memory_space<vmem>>, %arg13: memref<1x128xf32, #tpu.memory_space<vmem>>, %arg14: memref<128x256xf32, #tpu.memory_space<vmem>>, %arg15: memref<1x256xf32, #tpu.memory_space<vmem>>, %arg16: memref<256x128xf32, #tpu.memory_space<vmem>>, %arg17: memref<1x128xf32, #tpu.memory_space<vmem>>, %arg18: memref<16x128xf32, #tpu.memory_space<vmem>>, %arg19: memref<16x128xf32, #tpu.memory_space<vmem>>) attributes {dimension_semantics = [#tpu.dimension_semantics<parallel>], iteration_bounds = array<i64: 1>, scalar_prefetch = 0 : i64, scratch_operands = 0 : i64, tpu.core_type = #tpu.core_type<tc>, window_params = [{transform_indices = @transform_0, window_bounds = array<i64: 16, 128>}, {pipeline_mode = #tpu.pipeline_mode<synchronous>, transform_indices = @transform_1, window_bounds = array<i64: 128, 256>}, {pipeline_mode = #tpu.pipeline_mode<synchronous>, transform_indices = @transform_2, window_bounds = array<i64: 1, 256>}, {pipeline_mode = #tpu.pipeline_mode<synchronous>, transform_indices = @transform_3, window_bounds = array<i64: 256, 128>}, {pipeline_mode = #tpu.pipeline_mode<synchronous>, transform_indices = @transform_4, window_bounds = array<i64: 1, 128>}, {pipeline_mode = #tpu.pipeline_mode<synchronous>, transform_indices = @transform_5, window_bounds = array<i64: 128, 128>}, {pipeline_mode = #tpu.pipeline_mode<synchronous>, transform_indices = @transform_6, window_bounds = array<i64: 1, 128>}, {pipeline_mode = #tpu.pipeline_mode<synchronous>, transform_indices = @transform_7, window_bounds = array<i64: 128, 128>}, {pipeline_mode = #tpu.pipeline_mode<synchronous>, transform_indices = @transform_8, window_bounds = array<i64: 1, 128>}, {pipeline_mode = #tpu.pipeline_mode<synchronous>, transform_indices = @transform_9, window_bounds = array<i64: 128, 128>}, {pipeline_mode = #tpu.pipeline_mode<synchronous>, transform_indices = @transform_10, window_bounds = array<i64: 1, 128>}, {pipeline_mode = #tpu.pipeline_mode<synchronous>, transform_indices = @transform_11, window_bounds = array<i64: 128, 128>}, {pipeline_mode = #tpu.pipeline_mode<synchronous>, transform_indices = @transform_12, window_bounds = array<i64: 1, 128>}, {pipeline_mode = #tpu.pipeline_mode<synchronous>, transform_indices = @transform_13, window_bounds = array<i64: 128, 256>}, {pipeline_mode = #tpu.pipeline_mode<synchronous>, transform_indices = @transform_14, window_bounds = array<i64: 1, 256>}, {pipeline_mode = #tpu.pipeline_mode<synchronous>, transform_indices = @transform_15, window_bounds = array<i64: 256, 128>}, {pipeline_mode = #tpu.pipeline_mode<synchronous>, transform_indices = @transform_16, window_bounds = array<i64: 1, 128>}, {transform_indices = @transform_17, window_bounds = array<i64: 16, 128>}, {transform_indices = @transform_18, window_bounds = array<i64: 16, 128>}]} {
    %c0 = arith.constant 0 : index
    %c0_0 = arith.constant 0 : index
    %0 = vector.load %arg1[%c0, %c0_0] : memref<16x128xf32, #tpu.memory_space<vmem>>, vector<16x128xf32>
    %c0_1 = arith.constant 0 : index
    %c0_2 = arith.constant 0 : index
    %1 = vector.load %arg2[%c0_1, %c0_2] : memref<128x256xf32, #tpu.memory_space<vmem>>, vector<128x256xf32>
    %cst = arith.constant dense<0.000000e+00> : vector<16x256xf32>
    %2 = tpu.matmul %0, %1, %cst {dimension_numbers = #tpu.dot_dimension_numbers<[1], [0], [0], [1], [0, 0, 1, 1], [], []>} : vector<16x128xf32>, vector<128x256xf32>, vector<16x256xf32> -> vector<16x256xf32>
    %c0_3 = arith.constant 0 : index
    %c0_4 = arith.constant 0 : index
    %3 = vector.load %arg3[%c0_3, %c0_4] : memref<1x256xf32, #tpu.memory_space<vmem>>, vector<1x256xf32>
    %4 = vector.broadcast %3 : vector<1x256xf32> to vector<16x256xf32>
    %5 = arith.addf %2, %4 : vector<16x256xf32>
    %cst_5 = arith.constant 0.000000e+00 : f32
    %6 = vector.broadcast %cst_5 : f32 to vector<16x256xf32>
    %7 = arith.maximumf %5, %6 : vector<16x256xf32>
    %c0_6 = arith.constant 0 : index
    %c0_7 = arith.constant 0 : index
    %8 = vector.load %arg4[%c0_6, %c0_7] : memref<256x128xf32, #tpu.memory_space<vmem>>, vector<256x128xf32>
    %cst_8 = arith.constant dense<0.000000e+00> : vector<16x128xf32>
    %9 = tpu.matmul %7, %8, %cst_8 {dimension_numbers = #tpu.dot_dimension_numbers<[1], [0], [0], [1], [0, 0, 1, 1], [], []>} : vector<16x256xf32>, vector<256x128xf32>, vector<16x128xf32> -> vector<16x128xf32>
    %c0_9 = arith.constant 0 : index
    %c0_10 = arith.constant 0 : index
    %10 = vector.load %arg5[%c0_9, %c0_10] : memref<1x128xf32, #tpu.memory_space<vmem>>, vector<1x128xf32>
    %11 = vector.broadcast %10 : vector<1x128xf32> to vector<16x128xf32>
    %12 = arith.addf %9, %11 : vector<16x128xf32>
    %cst_11 = arith.constant 0.000000e+00 : f32
    %13 = vector.broadcast %cst_11 : f32 to vector<16x128xf32>
    %14 = arith.maximumf %12, %13 : vector<16x128xf32>
    %c0_12 = arith.constant 0 : index
    %c0_13 = arith.constant 0 : index
    %15 = vector.load %arg6[%c0_12, %c0_13] : memref<128x128xf32, #tpu.memory_space<vmem>>, vector<128x128xf32>
    %cst_14 = arith.constant dense<0.000000e+00> : vector<16x128xf32>
    %16 = tpu.matmul %14, %15, %cst_14 {dimension_numbers = #tpu.dot_dimension_numbers<[1], [0], [0], [1], [0, 0, 1, 1], [], []>} : vector<16x128xf32>, vector<128x128xf32>, vector<16x128xf32> -> vector<16x128xf32>
    %c0_15 = arith.constant 0 : index
    %c0_16 = arith.constant 0 : index
    %17 = vector.load %arg7[%c0_15, %c0_16] : memref<1x128xf32, #tpu.memory_space<vmem>>, vector<1x128xf32>
    %18 = vector.broadcast %17 : vector<1x128xf32> to vector<16x128xf32>
    %19 = arith.addf %16, %18 : vector<16x128xf32>
    %cst_17 = arith.constant 0.000000e+00 : f32
    %20 = vector.broadcast %cst_17 : f32 to vector<16x128xf32>
    %21 = arith.maximumf %19, %20 : vector<16x128xf32>
    %c0_18 = arith.constant 0 : index
    %c0_19 = arith.constant 0 : index
    %22 = vector.load %arg8[%c0_18, %c0_19] : memref<128x128xf32, #tpu.memory_space<vmem>>, vector<128x128xf32>
    %cst_20 = arith.constant dense<0.000000e+00> : vector<16x128xf32>
    %23 = tpu.matmul %21, %22, %cst_20 {dimension_numbers = #tpu.dot_dimension_numbers<[1], [0], [0], [1], [0, 0, 1, 1], [], []>} : vector<16x128xf32>, vector<128x128xf32>, vector<16x128xf32> -> vector<16x128xf32>
    %c0_21 = arith.constant 0 : index
    %c0_22 = arith.constant 0 : index
    %24 = vector.load %arg9[%c0_21, %c0_22] : memref<1x128xf32, #tpu.memory_space<vmem>>, vector<1x128xf32>
    %25 = vector.broadcast %24 : vector<1x128xf32> to vector<16x128xf32>
    %26 = arith.addf %23, %25 : vector<16x128xf32>
    %c0_23 = arith.constant 0 : index
    %c0_24 = arith.constant 0 : index
    %27 = vector.load %arg19[%c0_23, %c0_24] : memref<16x128xf32, #tpu.memory_space<vmem>>, vector<16x128xf32>
    tpu.vector_store %arg19[%c0_23, %c0_24], %26 {strides = array<i32>} : memref<16x128xf32, #tpu.memory_space<vmem>>, vector<16x128xf32>,
    %c0_25 = arith.constant 0 : index
    %c0_26 = arith.constant 0 : index
    %28 = vector.load %arg10[%c0_25, %c0_26] : memref<128x128xf32, #tpu.memory_space<vmem>>, vector<128x128xf32>
    %cst_27 = arith.constant dense<0.000000e+00> : vector<16x128xf32>
    %29 = tpu.matmul %26, %28, %cst_27 {dimension_numbers = #tpu.dot_dimension_numbers<[1], [0], [0], [1], [0, 0, 1, 1], [], []>} : vector<16x128xf32>, vector<128x128xf32>, vector<16x128xf32> -> vector<16x128xf32>
    %c0_28 = arith.constant 0 : index
    %c0_29 = arith.constant 0 : index
    %30 = vector.load %arg11[%c0_28, %c0_29] : memref<1x128xf32, #tpu.memory_space<vmem>>, vector<1x128xf32>
    %31 = vector.broadcast %30 : vector<1x128xf32> to vector<16x128xf32>
    %32 = arith.addf %29, %31 : vector<16x128xf32>
    %cst_30 = arith.constant 0.000000e+00 : f32
    %33 = vector.broadcast %cst_30 : f32 to vector<16x128xf32>
    %34 = arith.maximumf %32, %33 : vector<16x128xf32>
    %c0_31 = arith.constant 0 : index
    %c0_32 = arith.constant 0 : index
    %35 = vector.load %arg12[%c0_31, %c0_32] : memref<128x128xf32, #tpu.memory_space<vmem>>, vector<128x128xf32>
    %cst_33 = arith.constant dense<0.000000e+00> : vector<16x128xf32>
    %36 = tpu.matmul %34, %35, %cst_33 {dimension_numbers = #tpu.dot_dimension_numbers<[1], [0], [0], [1], [0, 0, 1, 1], [], []>} : vector<16x128xf32>, vector<128x128xf32>, vector<16x128xf32> -> vector<16x128xf32>
    %c0_34 = arith.constant 0 : index
    %c0_35 = arith.constant 0 : index
    %37 = vector.load %arg13[%c0_34, %c0_35] : memref<1x128xf32, #tpu.memory_space<vmem>>, vector<1x128xf32>
    %38 = vector.broadcast %37 : vector<1x128xf32> to vector<16x128xf32>
    %39 = arith.addf %36, %38 : vector<16x128xf32>
    %cst_36 = arith.constant 0.000000e+00 : f32
    %40 = vector.broadcast %cst_36 : f32 to vector<16x128xf32>
    %41 = arith.maximumf %39, %40 : vector<16x128xf32>
    %c0_37 = arith.constant 0 : index
    %c0_38 = arith.constant 0 : index
    %42 = vector.load %arg14[%c0_37, %c0_38] : memref<128x256xf32, #tpu.memory_space<vmem>>, vector<128x256xf32>
    %cst_39 = arith.constant dense<0.000000e+00> : vector<16x256xf32>
    %43 = tpu.matmul %41, %42, %cst_39 {dimension_numbers = #tpu.dot_dimension_numbers<[1], [0], [0], [1], [0, 0, 1, 1], [], []>} : vector<16x128xf32>, vector<128x256xf32>, vector<16x256xf32> -> vector<16x256xf32>
    %c0_40 = arith.constant 0 : index
    %c0_41 = arith.constant 0 : index
    %44 = vector.load %arg15[%c0_40, %c0_41] : memref<1x256xf32, #tpu.memory_space<vmem>>, vector<1x256xf32>
    %45 = vector.broadcast %44 : vector<1x256xf32> to vector<16x256xf32>
    %46 = arith.addf %43, %45 : vector<16x256xf32>
    %cst_42 = arith.constant 0.000000e+00 : f32
    %47 = vector.broadcast %cst_42 : f32 to vector<16x256xf32>
    %48 = arith.maximumf %46, %47 : vector<16x256xf32>
    %c0_43 = arith.constant 0 : index
    %c0_44 = arith.constant 0 : index
    %49 = vector.load %arg16[%c0_43, %c0_44] : memref<256x128xf32, #tpu.memory_space<vmem>>, vector<256x128xf32>
    %cst_45 = arith.constant dense<0.000000e+00> : vector<16x128xf32>
    %50 = tpu.matmul %48, %49, %cst_45 {dimension_numbers = #tpu.dot_dimension_numbers<[1], [0], [0], [1], [0, 0, 1, 1], [], []>} : vector<16x256xf32>, vector<256x128xf32>, vector<16x128xf32> -> vector<16x128xf32>
    %c0_46 = arith.constant 0 : index
    %c0_47 = arith.constant 0 : index
    %51 = vector.load %arg17[%c0_46, %c0_47] : memref<1x128xf32, #tpu.memory_space<vmem>>, vector<1x128xf32>
    %52 = vector.broadcast %51 : vector<1x128xf32> to vector<16x128xf32>
    %53 = arith.addf %50, %52 : vector<16x128xf32>
    %c0_48 = arith.constant 0 : index
    %c0_49 = arith.constant 0 : index
    %54 = vector.load %arg18[%c0_48, %c0_49] : memref<16x128xf32, #tpu.memory_space<vmem>>, vector<16x128xf32>
    tpu.vector_store %arg18[%c0_48, %c0_49], %53 {strides = array<i32>} : memref<16x128xf32, #tpu.memory_space<vmem>>, vector<16x128xf32>,
    return
  }
  func.func @transform_0(%arg0: i32) -> (i32, i32) {
    %c0_i32 = arith.constant 0 : i32
    %c0_i32_0 = arith.constant 0 : i32
    return %arg0, %c0_i32 : i32, i32
  }
  func.func @transform_1(%arg0: i32) -> (i32, i32) {
    %c0_i32 = arith.constant 0 : i32
    %c0_i32_0 = arith.constant 0 : i32
    %c0_i32_1 = arith.constant 0 : i32
    return %c0_i32, %c0_i32_0 : i32, i32
  }
  func.func @transform_2(%arg0: i32) -> (i32, i32) {
    %c0_i32 = arith.constant 0 : i32
    %c0_i32_0 = arith.constant 0 : i32
    %c0_i32_1 = arith.constant 0 : i32
    return %c0_i32, %c0_i32_0 : i32, i32
  }
  func.func @transform_3(%arg0: i32) -> (i32, i32) {
    %c0_i32 = arith.constant 0 : i32
    %c0_i32_0 = arith.constant 0 : i32
    %c0_i32_1 = arith.constant 0 : i32
    return %c0_i32, %c0_i32_0 : i32, i32
  }
  func.func @transform_4(%arg0: i32) -> (i32, i32) {
    %c0_i32 = arith.constant 0 : i32
    %c0_i32_0 = arith.constant 0 : i32
    %c0_i32_1 = arith.constant 0 : i32
    return %c0_i32, %c0_i32_0 : i32, i32
  }
  func.func @transform_5(%arg0: i32) -> (i32, i32) {
    %c0_i32 = arith.constant 0 : i32
    %c0_i32_0 = arith.constant 0 : i32
    %c0_i32_1 = arith.constant 0 : i32
    return %c0_i32, %c0_i32_0 : i32, i32
  }
  func.func @transform_6(%arg0: i32) -> (i32, i32) {
    %c0_i32 = arith.constant 0 : i32
    %c0_i32_0 = arith.constant 0 : i32
    %c0_i32_1 = arith.constant 0 : i32
    return %c0_i32, %c0_i32_0 : i32, i32
  }
  func.func @transform_7(%arg0: i32) -> (i32, i32) {
    %c0_i32 = arith.constant 0 : i32
    %c0_i32_0 = arith.constant 0 : i32
    %c0_i32_1 = arith.constant 0 : i32
    return %c0_i32, %c0_i32_0 : i32, i32
  }
  func.func @transform_8(%arg0: i32) -> (i32, i32) {
    %c0_i32 = arith.constant 0 : i32
    %c0_i32_0 = arith.constant 0 : i32
    %c0_i32_1 = arith.constant 0 : i32
    return %c0_i32, %c0_i32_0 : i32, i32
  }
  func.func @transform_9(%arg0: i32) -> (i32, i32) {
    %c0_i32 = arith.constant 0 : i32
    %c0_i32_0 = arith.constant 0 : i32
    %c0_i32_1 = arith.constant 0 : i32
    return %c0_i32, %c0_i32_0 : i32, i32
  }
  func.func @transform_10(%arg0: i32) -> (i32, i32) {
    %c0_i32 = arith.constant 0 : i32
    %c0_i32_0 = arith.constant 0 : i32
    %c0_i32_1 = arith.constant 0 : i32
    return %c0_i32, %c0_i32_0 : i32, i32
  }
  func.func @transform_11(%arg0: i32) -> (i32, i32) {
    %c0_i32 = arith.constant 0 : i32
    %c0_i32_0 = arith.constant 0 : i32
    %c0_i32_1 = arith.constant 0 : i32
    return %c0_i32, %c0_i32_0 : i32, i32
  }
  func.func @transform_12(%arg0: i32) -> (i32, i32) {
    %c0_i32 = arith.constant 0 : i32
    %c0_i32_0 = arith.constant 0 : i32
    %c0_i32_1 = arith.constant 0 : i32
    return %c0_i32, %c0_i32_0 : i32, i32
  }
  func.func @transform_13(%arg0: i32) -> (i32, i32) {
    %c0_i32 = arith.constant 0 : i32
    %c0_i32_0 = arith.constant 0 : i32
    %c0_i32_1 = arith.constant 0 : i32
    return %c0_i32, %c0_i32_0 : i32, i32
  }
  func.func @transform_14(%arg0: i32) -> (i32, i32) {
    %c0_i32 = arith.constant 0 : i32
    %c0_i32_0 = arith.constant 0 : i32
    %c0_i32_1 = arith.constant 0 : i32
    return %c0_i32, %c0_i32_0 : i32, i32
  }
  func.func @transform_15(%arg0: i32) -> (i32, i32) {
    %c0_i32 = arith.constant 0 : i32
    %c0_i32_0 = arith.constant 0 : i32
    %c0_i32_1 = arith.constant 0 : i32
    return %c0_i32, %c0_i32_0 : i32, i32
  }
  func.func @transform_16(%arg0: i32) -> (i32, i32) {
    %c0_i32 = arith.constant 0 : i32
    %c0_i32_0 = arith.constant 0 : i32
    %c0_i32_1 = arith.constant 0 : i32
    return %c0_i32, %c0_i32_0 : i32, i32
  }
  func.func @transform_17(%arg0: i32) -> (i32, i32) {
    %c0_i32 = arith.constant 0 : i32
    %c0_i32_0 = arith.constant 0 : i32
    return %arg0, %c0_i32 : i32, i32
  }
  func.func @transform_18(%arg0: i32) -> (i32, i32) {
    %c0_i32 = arith.constant 0 : i32
    %c0_i32_0 = arith.constant 0 : i32
    return %arg0, %c0_i32 : i32, i32
  }
}

</mosaic_0001>

<llo_original>
// kernel: weather_autoencoder_forward.1
$region0: #{weather_autoencoder_forward.1}
  #allocation0 [shape = 'u32[]', space=smem, size = 0x4, offset = 0x4, fixed_abs, tag = 'smem constant byte address 0x4 - core index']
  #allocation1 [shape = 'u32[144,128]{1,0:T(1,128)}', space=vmem, size = 0x12000, scoped, tag = 'internal scratch']
  %s0 = inlined_call_operand.vmem [shape: f32[16,128], index: 0, kind: input, shape index: {}]
  %s1 = inlined_call_operand.hbm [shape: f32[128,256], index: 1, kind: input, shape index: {}]
  %s2 = inlined_call_operand.vmem [shape: f32[1,256], index: 2, kind: input, shape index: {}]
  %s3 = inlined_call_operand.hbm [shape: f32[256,128], index: 3, kind: input, shape index: {}]
  %s4 = inlined_call_operand.vmem [shape: f32[1,128], index: 4, kind: input, shape index: {}]
  %s5 = inlined_call_operand.hbm [shape: f32[128,128], index: 5, kind: input, shape index: {}]
  %s6 = inlined_call_operand.vmem [shape: f32[1,128], index: 6, kind: input, shape index: {}]
  %s7 = inlined_call_operand.hbm [shape: f32[128,128], index: 7, kind: input, shape index: {}]
  %s8 = inlined_call_operand.vmem [shape: f32[1,128], index: 8, kind: input, shape index: {}]
  %s9 = inlined_call_operand.hbm [shape: f32[128,128], index: 9, kind: input, shape index: {}]
  %s10 = inlined_call_operand.vmem [shape: f32[1,128], index: 10, kind: input, shape index: {}]
  %s11 = inlined_call_operand.hbm [shape: f32[128,128], index: 11, kind: input, shape index: {}]
  %s12 = inlined_call_operand.vmem [shape: f32[1,128], index: 12, kind: input, shape index: {}]
  %s13 = inlined_call_operand.hbm [shape: f32[128,256], index: 13, kind: input, shape index: {}]
  %s14 = inlined_call_operand.vmem [shape: f32[1,256], index: 14, kind: input, shape index: {}]
  %s15 = inlined_call_operand.hbm [shape: f32[256,128], index: 15, kind: input, shape index: {}]
  %s16 = inlined_call_operand.vmem [shape: f32[1,128], index: 16, kind: input, shape index: {}]
  %s17 = inlined_call_operand.hbm [shape: f32[16,128], index: 17, kind: output, shape index: {0}]
  %s18 = inlined_call_operand.hbm [shape: f32[16,128], index: 18, kind: output, shape index: {1}]
  %19 = xla_tuple %s17, %s18
  %s20 = sld [smem:[#allocation0]]
  $region118: #{weather_autoencoder_forward.1} parent=0
    _
  %s22 = ssub.s32 1, %s20
  %s23 = scalar_select 0, %s22, %s20
  $region1: #{weather_autoencoder_forward.1} parent=0
    #allocation2 [shape = 'u8[131072]{0}', space=vmem, size = 0x20000, scoped, tag = 'input window, operand 1, single buffered']
    #allocation3 [shape = 's32[1]{0}', space=sflag, size = 0x4, scoped, tag = 'scoped memory for weather_autoencoder_forward.1']
    #allocation4 [shape = 's32[1]{0}', space=sflag, size = 0x4, scoped, tag = 'scoped memory for weather_autoencoder_forward.1']
    #allocation5 [shape = 'u8[131072]{0}', space=vmem, size = 0x20000, scoped, tag = 'input window, operand 3, single buffered']
    #allocation6 [shape = 's32[1]{0}', space=sflag, size = 0x4, scoped, tag = 'scoped memory for weather_autoencoder_forward.1']
    #allocation7 [shape = 'u8[65536]{0}', space=vmem, size = 0x10000, scoped, tag = 'input window, operand 5, single buffered']
    #allocation8 [shape = 'u8[65536]{0}', space=vmem, size = 0x10000, scoped, tag = 'input window, operand 7, single buffered']
    #allocation9 [shape = 's32[1]{0}', space=sflag, size = 0x4, scoped, tag = 'scoped memory for weather_autoencoder_forward.1']
    #allocation10 [shape = 'u8[65536]{0}', space=vmem, size = 0x10000, scoped, tag = 'input window, operand 9, single buffered']
    #allocation11 [shape = 'u8[65536]{0}', space=vmem, size = 0x10000, scoped, tag = 'input window, operand 11, single buffered']
    #allocation12 [shape = 's32[1]{0}', space=sflag, size = 0x4, scoped, tag = 'scoped memory for weather_autoencoder_forward.1']
    #allocation13 [shape = 'u8[131072]{0}', space=vmem, size = 0x20000, scoped, tag = 'input window, operand 13, single buffered']
    #allocation14 [shape = 'u8[131072]{0}', space=vmem, size = 0x20000, scoped, tag = 'input window, operand 15, single buffered']
    #allocation15 [shape = 's32[1]{0}', space=sflag, size = 0x4, scoped, tag = 'scoped memory for weather_autoencoder_forward.1']
    #allocation16 [shape = 'u8[8192]{0}', space=vmem, size = 0x2000, scoped, tag = 'output window, operand 0, single buffered']
    #allocation17 [shape = 'u8[8192]{0}', space=vmem, size = 0x2000, scoped, tag = 'output window, operand 1, single buffered']
    #allocation18 [shape = 's32[1]{0}', space=sflag, size = 0x4, scoped, tag = 'scoped memory for weather_autoencoder_forward.1']
    %24 = vsyncpa [#allocation3], 0
    %25 = vsyncpa [#allocation6], 0
    %26 = vsyncpa [#allocation9], 0
    %27 = vsyncpa [#allocation12], 0
    %28 = vsyncpa [#allocation15], 0
    %29 = vsyncpa [#allocation4], 0
    %30 = vsyncpa [#allocation18], 0
    // Predicated region
    $region2: #{weather_autoencoder_forward.1} parent=1 // pred_check
      _
    $region3: #{weather_autoencoder_forward.1} parent=1 // pred_check_branch
      %32 = sbr.rel (0) target = $region5
    $region4: #{weather_autoencoder_forward.1} parent=1 // pred_region
      _
    $region5: #{weather_autoencoder_forward.1} parent=1 // pred_fallthru
      _
    // Predicated region
    $region6: #{weather_autoencoder_forward.1} parent=1 // pred_check
      _
    $region7: #{weather_autoencoder_forward.1} parent=1 // pred_check_branch
      %34 = sbr.rel (0) target = $region9
    $region8: #{weather_autoencoder_forward.1} parent=1 // pred_region
      %s36 = ssub.s32 4096, 4096
      %37 = vsyncadd [#allocation3], %s36
      %s38 = sshll.u32 [#allocation2], 4
      %s39 = int_to_ptr.vmem [resolvable:$true] %s38
      %44 = dma.hbm_to_vmem [thread:$0]  %s1, 4096, %s39, [#allocation3], 256, 256, 16
    $region9: #{weather_autoencoder_forward.1} parent=1 // pred_fallthru
      _
    // Predicated region
    $region10: #{weather_autoencoder_forward.1} parent=1 // pred_check
      _
    $region11: #{weather_autoencoder_forward.1} parent=1 // pred_check_branch
      %46 = sbr.rel (0) target = $region13
    $region12: #{weather_autoencoder_forward.1} parent=1 // pred_region
      _
    $region13: #{weather_autoencoder_forward.1} parent=1 // pred_fallthru
      _
    // Predicated region
    $region14: #{weather_autoencoder_forward.1} parent=1 // pred_check
      _
    $region15: #{weather_autoencoder_forward.1} parent=1 // pred_check_branch
      %48 = sbr.rel (0) target = $region17
    $region16: #{weather_autoencoder_forward.1} parent=1 // pred_region
      %s50 = ssub.s32 4096, 4096
      %51 = vsyncadd [#allocation6], %s50
      %s52 = sshll.u32 [#allocation5], 4
      %s53 = int_to_ptr.vmem [resolvable:$true] %s52
      %58 = dma.hbm_to_vmem [thread:$0]  %s3, 4096, %s53, [#allocation6], 128, 128, 8
    $region17: #{weather_autoencoder_forward.1} parent=1 // pred_fallthru
      _
    // Predicated region
    $region18: #{weather_autoencoder_forward.1} parent=1 // pred_check
      _
    $region19: #{weather_autoencoder_forward.1} parent=1 // pred_check_branch
      %60 = sbr.rel (0) target = $region21
    $region20: #{weather_autoencoder_forward.1} parent=1 // pred_region
      _
    $region21: #{weather_autoencoder_forward.1} parent=1 // pred_fallthru
      _
    // Predicated region
    $region22: #{weather_autoencoder_forward.1} parent=1 // pred_check
      _
    $region23: #{weather_autoencoder_forward.1} parent=1 // pred_check_branch
      %62 = sbr.rel (0) target = $region25
    $region24: #{weather_autoencoder_forward.1} parent=1 // pred_region
      %s64 = ssub.s32 2048, 2048
      %65 = vsyncadd [#allocation6], %s64
      %s66 = sshll.u32 [#allocation7], 4
      %s67 = int_to_ptr.vmem [resolvable:$true] %s66
      %72 = dma.hbm_to_vmem [thread:$0]  %s5, 2048, %s67, [#allocation6], 128, 128, 8
    $region25: #{weather_autoencoder_forward.1} parent=1 // pred_fallthru
      _
    // Predicated region
    $region26: #{weather_autoencoder_forward.1} parent=1 // pred_check
      _
    $region27: #{weather_autoencoder_forward.1} parent=1 // pred_check_branch
      %74 = sbr.rel (0) target = $region29
    $region28: #{weather_autoencoder_forward.1} parent=1 // pred_region
      _
    $region29: #{weather_autoencoder_forward.1} parent=1 // pred_fallthru
      _
    // Predicated region
    $region30: #{weather_autoencoder_forward.1} parent=1 // pred_check
      _
    $region31: #{weather_autoencoder_forward.1} parent=1 // pred_check_branch
      %76 = sbr.rel (0) target = $region33
    $region32: #{weather_autoencoder_forward.1} parent=1 // pred_region
      %s78 = ssub.s32 2048, 2048
      %79 = vsyncadd [#allocation9], %s78
      %s80 = sshll.u32 [#allocation8], 4
      %s81 = int_to_ptr.vmem [resolvable:$true] %s80
      %86 = dma.hbm_to_vmem [thread:$0]  %s7, 2048, %s81, [#allocation9], 128, 128, 8
    $region33: #{weather_autoencoder_forward.1} parent=1 // pred_fallthru
      _
    // Predicated region
    $region34: #{weather_autoencoder_forward.1} parent=1 // pred_check
      _
    $region35: #{weather_autoencoder_forward.1} parent=1 // pred_check_branch
      %88 = sbr.rel (0) target = $region37
    $region36: #{weather_autoencoder_forward.1} parent=1 // pred_region
      _
    $region37: #{weather_autoencoder_forward.1} parent=1 // pred_fallthru
      _
    // Predicated region
    $region38: #{weather_autoencoder_forward.1} parent=1 // pred_check
      _
    $region39: #{weather_autoencoder_forward.1} parent=1 // pred_check_branch
      %90 = sbr.rel (0) target = $region41
    $region40: #{weather_autoencoder_forward.1} parent=1 // pred_region
      %s92 = ssub.s32 2048, 2048
      %93 = vsyncadd [#allocation9], %s92
      %s94 = sshll.u32 [#allocation10], 4
      %s95 = int_to_ptr.vmem [resolvable:$true] %s94
      %100 = dma.hbm_to_vmem [thread:$0]  %s9, 2048, %s95, [#allocation9], 128, 128, 8
    $region41: #{weather_autoencoder_forward.1} parent=1 // pred_fallthru
      _
    // Predicated region
    $region42: #{weather_autoencoder_forward.1} parent=1 // pred_check
      _
    $region43: #{weather_autoencoder_forward.1} parent=1 // pred_check_branch
      %102 = sbr.rel (0) target = $region45
    $region44: #{weather_autoencoder_forward.1} parent=1 // pred_region
      _
    $region45: #{weather_autoencoder_forward.1} parent=1 // pred_fallthru
      _
    // Predicated region
    $region46: #{weather_autoencoder_forward.1} parent=1 // pred_check
      _
    $region47: #{weather_autoencoder_forward.1} parent=1 // pred_check_branch
      %104 = sbr.rel (0) target = $region49
    $region48: #{weather_autoencoder_forward.1} parent=1 // pred_region
      %s106 = ssub.s32 2048, 2048
      %107 = vsyncadd [#allocation12], %s106
      %s108 = sshll.u32 [#allocation11], 4
      %s109 = int_to_ptr.vmem [resolvable:$true] %s108
      %114 = dma.hbm_to_vmem [thread:$0]  %s11, 2048, %s109, [#allocation12], 128, 128, 8
    $region49: #{weather_autoencoder_forward.1} parent=1 // pred_fallthru
      _
    // Predicated region
    $region50: #{weather_autoencoder_forward.1} parent=1 // pred_check
      _
    $region51: #{weather_autoencoder_forward.1} parent=1 // pred_check_branch
      %116 = sbr.rel (0) target = $region53
    $region52: #{weather_autoencoder_forward.1} parent=1 // pred_region
      _
    $region53: #{weather_autoencoder_forward.1} parent=1 // pred_fallthru
      _
    // Predicated region
    $region54: #{weather_autoencoder_forward.1} parent=1 // pred_check
      _
    $region55: #{weather_autoencoder_forward.1} parent=1 // pred_check_branch
      %118 = sbr.rel (0) target = $region57
    $region56: #{weather_autoencoder_forward.1} parent=1 // pred_region
      %s120 = ssub.s32 4096, 4096
      %121 = vsyncadd [#allocation12], %s120
      %s122 = sshll.u32 [#allocation13], 4
      %s123 = int_to_ptr.vmem [resolvable:$true] %s122
      %128 = dma.hbm_to_vmem [thread:$0]  %s13, 4096, %s123, [#allocation12], 256, 256, 16
    $region57: #{weather_autoencoder_forward.1} parent=1 // pred_fallthru
      _
    // Predicated region
    $region58: #{weather_autoencoder_forward.1} parent=1 // pred_check
      _
    $region59: #{weather_autoencoder_forward.1} parent=1 // pred_check_branch
      %130 = sbr.rel (0) target = $region61
    $region60: #{weather_autoencoder_forward.1} parent=1 // pred_region
      _
    $region61: #{weather_autoencoder_forward.1} parent=1 // pred_fallthru
      _
    // Predicated region
    $region62: #{weather_autoencoder_forward.1} parent=1 // pred_check
      _
    $region63: #{weather_autoencoder_forward.1} parent=1 // pred_check_branch
      %132 = sbr.rel (0) target = $region65
    $region64: #{weather_autoencoder_forward.1} parent=1 // pred_region
      %s134 = ssub.s32 4096, 4096
      %135 = vsyncadd [#allocation15], %s134
      %s136 = sshll.u32 [#allocation14], 4
      %s137 = int_to_ptr.vmem [resolvable:$true] %s136
      %142 = dma.hbm_to_vmem [thread:$0]  %s15, 4096, %s137, [#allocation15], 128, 128, 8
    $region65: #{weather_autoencoder_forward.1} parent=1 // pred_fallthru
      _
    // Predicated region
    $region66: #{weather_autoencoder_forward.1} parent=1 // pred_check
      _
    $region67: #{weather_autoencoder_forward.1} parent=1 // pred_check_branch
      %144 = sbr.rel (0) target = $region69
    $region68: #{weather_autoencoder_forward.1} parent=1 // pred_region
      _
    $region69: #{weather_autoencoder_forward.1} parent=1 // pred_fallthru
      _
    // Predicated region
    $region70: #{weather_autoencoder_forward.1} parent=1 // pred_check
      _
    $region71: #{weather_autoencoder_forward.1} parent=1 // pred_check_branch
      %146 = sbr.rel (0) target = $region73
    $region72: #{weather_autoencoder_forward.1} parent=1 // pred_region
      %147 = dma.done [#allocation3], 4096
    $region73: #{weather_autoencoder_forward.1} parent=1 // pred_fallthru
      _
    // Predicated region
    $region74: #{weather_autoencoder_forward.1} parent=1 // pred_check
      _
    $region75: #{weather_autoencoder_forward.1} parent=1 // pred_check_branch
      %149 = sbr.rel (0) target = $region77
    $region76: #{weather_autoencoder_forward.1} parent=1 // pred_region
      %150 = dma.done [#allocation6], 4096
    $region77: #{weather_autoencoder_forward.1} parent=1 // pred_fallthru
      _
    // Predicated region
    $region78: #{weather_autoencoder_forward.1} parent=1 // pred_check
      _
    $region79: #{weather_autoencoder_forward.1} parent=1 // pred_check_branch
      %152 = sbr.rel (0) target = $region81
    $region80: #{weather_autoencoder_forward.1} parent=1 // pred_region
      %153 = dma.done [#allocation6], 2048
    $region81: #{weather_autoencoder_forward.1} parent=1 // pred_fallthru
      _
    // Predicated region
    $region82: #{weather_autoencoder_forward.1} parent=1 // pred_check
      _
    $region83: #{weather_autoencoder_forward.1} parent=1 // pred_check_branch
      %155 = sbr.rel (0) target = $region85
    $region84: #{weather_autoencoder_forward.1} parent=1 // pred_region
      %156 = dma.done [#allocation9], 2048
    $region85: #{weather_autoencoder_forward.1} parent=1 // pred_fallthru
      _
    // Predicated region
    $region86: #{weather_autoencoder_forward.1} parent=1 // pred_check
      _
    $region87: #{weather_autoencoder_forward.1} parent=1 // pred_check_branch
      %158 = sbr.rel (0) target = $region89
    $region88: #{weather_autoencoder_forward.1} parent=1 // pred_region
      %159 = dma.done [#allocation9], 2048
    $region89: #{weather_autoencoder_forward.1} parent=1 // pred_fallthru
      _
    // Predicated region
    $region90: #{weather_autoencoder_forward.1} parent=1 // pred_check
      _
    $region91: #{weather_autoencoder_forward.1} parent=1 // pred_check_branch
      %161 = sbr.rel (0) target = $region93
    $region92: #{weather_autoencoder_forward.1} parent=1 // pred_region
      %162 = dma.done [#allocation12], 2048
    $region93: #{weather_autoencoder_forward.1} parent=1 // pred_fallthru
      _
    // Predicated region
    $region94: #{weather_autoencoder_forward.1} parent=1 // pred_check
      _
    $region95: #{weather_autoencoder_forward.1} parent=1 // pred_check_branch
      %164 = sbr.rel (0) target = $region97
    $region96: #{weather_autoencoder_forward.1} parent=1 // pred_region
      %165 = dma.done [#allocation12], 4096
    $region97: #{weather_autoencoder_forward.1} parent=1 // pred_fallthru
      _
    // Predicated region
    $region98: #{weather_autoencoder_forward.1} parent=1 // pred_check
      _
    $region99: #{weather_autoencoder_forward.1} parent=1 // pred_check_branch
      %167 = sbr.rel (0) target = $region101
    $region100: #{weather_autoencoder_forward.1} parent=1 // pred_region
      %168 = dma.done [#allocation15], 4096
    $region101: #{weather_autoencoder_forward.1} parent=1 // pred_fallthru
      _
    %v169 = vld [vmem:[%s0] sm:$0xff]
    %v170 = vld [vmem:[%s0 + $0x8] sm:$0xff]
    %v171 = vld [vmem:[#allocation2] sm:$0xff]
    %v172 = vld [vmem:[#allocation2 + $0x8] sm:$0xff]
    %v173 = vld [vmem:[#allocation2 + $0x10] sm:$0xff]
    %v174 = vld [vmem:[#allocation2 + $0x18] sm:$0xff]
    %v175 = vld [vmem:[#allocation2 + $0x20] sm:$0xff]
    %v176 = vld [vmem:[#allocation2 + $0x28] sm:$0xff]
    %v177 = vld [vmem:[#allocation2 + $0x30] sm:$0xff]
    %v178 = vld [vmem:[#allocation2 + $0x38] sm:$0xff]
    %v179 = vld [vmem:[#allocation2 + $0x40] sm:$0xff]
    %v180 = vld [vmem:[#allocation2 + $0x48] sm:$0xff]
    %v181 = vld [vmem:[#allocation2 + $0x50] sm:$0xff]
    %v182 = vld [vmem:[#allocation2 + $0x58] sm:$0xff]
    %v183 = vld [vmem:[#allocation2 + $0x60] sm:$0xff]
    %v184 = vld [vmem:[#allocation2 + $0x68] sm:$0xff]
    %v185 = vld [vmem:[#allocation2 + $0x70] sm:$0xff]
    %v186 = vld [vmem:[#allocation2 + $0x78] sm:$0xff]
    %v187 = vld [vmem:[#allocation2 + $0x80] sm:$0xff]
    %v188 = vld [vmem:[#allocation2 + $0x88] sm:$0xff]
    %v189 = vld [vmem:[#allocation2 + $0x90] sm:$0xff]
    %v190 = vld [vmem:[#allocation2 + $0x98] sm:$0xff]
    %v191 = vld [vmem:[#allocation2 + $0xa0] sm:$0xff]
    %v192 = vld [vmem:[#allocation2 + $0xa8] sm:$0xff]
    %v193 = vld [vmem:[#allocation2 + $0xb0] sm:$0xff]
    %v194 = vld [vmem:[#allocation2 + $0xb8] sm:$0xff]
    %v195 = vld [vmem:[#allocation2 + $0xc0] sm:$0xff]
    %v196 = vld [vmem:[#allocation2 + $0xc8] sm:$0xff]
    %v197 = vld [vmem:[#allocation2 + $0xd0] sm:$0xff]
    %v198 = vld [vmem:[#allocation2 + $0xd8] sm:$0xff]
    %v199 = vld [vmem:[#allocation2 + $0xe0] sm:$0xff]
    %v200 = vld [vmem:[#allocation2 + $0xe8] sm:$0xff]
    %v201 = vld [vmem:[#allocation2 + $0xf0] sm:$0xff]
    %v202 = vld [vmem:[#allocation2 + $0xf8] sm:$0xff]
    %v203 = vld [vmem:[%s2] sm:$0x3]
    %v205 = vlaneseq
    %v206 = vshrl.u32 %v205, 7
    %v207 = vsub.s32 0, %v206
    %v208 = vrot.slane %v203, %v207
    %v209 = vlaneseq
    %v210 = vshrl.u32 %v209, 7
    %v211 = vsub.s32 1, %v210
    %v212 = vrot.slane %v203, %v211
    %215 = vmatprep.subr.mxu0 %v172
    %216 = vmatpush1.msra.mxu0 %v171
    %217 = vmatprep.subr.mxu0 %v174
    %218 = vmatpush1.msra.mxu0 %v173
    %219 = vmatprep.subr.mxu0 %v176
    %220 = vmatpush1.msra.mxu0 %v175
    %221 = vmatprep.subr.mxu0 %v178
    %222 = vmatpush1.msra.mxu0 %v177
    %223 = vmatprep.subr.mxu0 %v180
    %224 = vmatpush1.msra.mxu0 %v179
    %225 = vmatprep.subr.mxu0 %v182
    %226 = vmatpush1.msra.mxu0 %v181
    %227 = vmatprep.subr.mxu0 %v184
    %228 = vmatpush1.msra.mxu0 %v183
    %229 = vmatprep.subr.mxu0 %v186
    %230 = vmatpush1.msra.mxu0 %v185
    %231 = vmatprep.subr.mxu0 %v188
    %232 = vmatpush1.msra.mxu0 %v187
    %233 = vmatprep.subr.mxu0 %v190
    %234 = vmatpush1.msra.mxu0 %v189
    %235 = vmatprep.subr.mxu0 %v192
    %236 = vmatpush1.msra.mxu0 %v191
    %237 = vmatprep.subr.mxu0 %v194
    %238 = vmatpush1.msra.mxu0 %v193
    %239 = vmatprep.subr.mxu0 %v196
    %240 = vmatpush1.msra.mxu0 %v195
    %241 = vmatprep.subr.mxu0 %v198
    %242 = vmatpush1.msra.mxu0 %v197
    %243 = vmatprep.subr.mxu0 %v200
    %244 = vmatpush1.msra.mxu0 %v199
    %245 = vmatprep.subr.mxu0 %v202
    %246 = vmatpush1.msra.mxu0 %v201
    %247 = vmatprep.subr.mxu0 0.0
    %248 = vmatpush1.msra.mxu0 0.0
    %249 = vmatprep.subr.mxu0 0.0
    %250 = vmatpush1.msra.mxu0 0.0
    %251 = vmatprep.subr.mxu0 0.0
    %252 = vmatpush1.msra.mxu0 0.0
    %253 = vmatprep.subr.mxu0 0.0
    %254 = vmatpush1.msra.mxu0 0.0
    %255 = vmatprep.subr.mxu0 0.0
    %256 = vmatpush1.msra.mxu0 0.0
    %257 = vmatprep.subr.mxu0 0.0
    %258 = vmatpush1.msra.mxu0 0.0
    %259 = vmatprep.subr.mxu0 0.0
    %260 = vmatpush1.msra.mxu0 0.0
    %261 = vmatprep.subr.mxu0 0.0
    %262 = vmatpush1.msra.mxu0 0.0
    %263 = vmatprep.subr.mxu0 0.0
    %264 = vmatpush1.msra.mxu0 0.0
    %265 = vmatprep.subr.mxu0 0.0
    %266 = vmatpush1.msra.mxu0 0.0
    %267 = vmatprep.subr.mxu0 0.0
    %268 = vmatpush1.msra.mxu0 0.0
    %269 = vmatprep.subr.mxu0 0.0
    %270 = vmatpush1.msra.mxu0 0.0
    %271 = vmatprep.subr.mxu0 0.0
    %272 = vmatpush1.msra.mxu0 0.0
    %273 = vmatprep.subr.mxu0 0.0
    %274 = vmatpush1.msra.mxu0 0.0
    %275 = vmatprep.subr.mxu0 0.0
    %276 = vmatpush1.msra.mxu0 0.0
    %277 = vmatprep.subr.mxu0 0.0
    %278 = vmatpush1.msra.mxu0 0.0
    %279 = vmatprep.mubr.f32.mxu0 0.0
    %280 = vmatmul.mubr.f32.gmra.mrb[0].mxu0 %v169
    %v281 = vpop.f32.mrb[0].mxu0
    %v282 = vadd.f32 %v208, %v281
    %v283 = vpop.f32.mrb[0].mxu0
    %v284 = vadd.f32 %v212, %v283
    %285 = vmatprep.mubr.f32.mxu0 0.0
    %286 = vmatmul.mubr.f32.gmra.mrb[0].mxu0 %v170
    %v287 = vpop.f32.mrb[0].mxu0
    %v288 = vadd.f32 %v208, %v287
    %v289 = vpop.f32.mrb[0].mxu0
    %v290 = vadd.f32 %v212, %v289
    %291 = vdwg.mxu0
    %v292 = vmax.f32 %v282, 0.0
    %v293 = vmax.f32 %v284, 0.0
    %v294 = vmax.f32 %v288, 0.0
    %v295 = vmax.f32 %v290, 0.0
    %v296 = vld [vmem:[#allocation5] sm:$0xff]
    %v297 = vld [vmem:[#allocation5 + $0x8] sm:$0xff]
    %v298 = vld [vmem:[#allocation5 + $0x10] sm:$0xff]
    %v299 = vld [vmem:[#allocation5 + $0x18] sm:$0xff]
    %v300 = vld [vmem:[#allocation5 + $0x20] sm:$0xff]
    %v301 = vld [vmem:[#allocation5 + $0x28] sm:$0xff]
    %v302 = vld [vmem:[#allocation5 + $0x30] sm:$0xff]
    %v303 = vld [vmem:[#allocation5 + $0x38] sm:$0xff]
    %v304 = vld [vmem:[#allocation5 + $0x40] sm:$0xff]
    %v305 = vld [vmem:[#allocation5 + $0x48] sm:$0xff]
    %v306 = vld [vmem:[#allocation5 + $0x50] sm:$0xff]
    %v307 = vld [vmem:[#allocation5 + $0x58] sm:$0xff]
    %v308 = vld [vmem:[#allocation5 + $0x60] sm:$0xff]
    %v309 = vld [vmem:[#allocation5 + $0x68] sm:$0xff]
    %v310 = vld [vmem:[#allocation5 + $0x70] sm:$0xff]
    %v311 = vld [vmem:[#allocation5 + $0x78] sm:$0xff]
    %v312 = vld [vmem:[#allocation5 + $0x80] sm:$0xff]
    %v313 = vld [vmem:[#allocation5 + $0x88] sm:$0xff]
    %v314 = vld [vmem:[#allocation5 + $0x90] sm:$0xff]
    %v315 = vld [vmem:[#allocation5 + $0x98] sm:$0xff]
    %v316 = vld [vmem:[#allocation5 + $0xa0] sm:$0xff]
    %v317 = vld [vmem:[#allocation5 + $0xa8] sm:$0xff]
    %v318 = vld [vmem:[#allocation5 + $0xb0] sm:$0xff]
    %v319 = vld [vmem:[#allocation5 + $0xb8] sm:$0xff]
    %v320 = vld [vmem:[#allocation5 + $0xc0] sm:$0xff]
    %v321 = vld [vmem:[#allocation5 + $0xc8] sm:$0xff]
    %v322 = vld [vmem:[#allocation5 + $0xd0] sm:$0xff]
    %v323 = vld [vmem:[#allocation5 + $0xd8] sm:$0xff]
    %v324 = vld [vmem:[#allocation5 + $0xe0] sm:$0xff]
    %v325 = vld [vmem:[#allocation5 + $0xe8] sm:$0xff]
    %v326 = vld [vmem:[#allocation5 + $0xf0] sm:$0xff]
    %v327 = vld [vmem:[#allocation5 + $0xf8] sm:$0xff]
    %v328 = vld [vmem:[%s4] sm:$0x1]
    %v330 = vlaneseq
    %v331 = vshrl.u32 %v330, 7
    %v332 = vsub.s32 0, %v331
    %v333 = vrot.slane %v328, %v332
    %335 = vmatprep.subr.mxu0 0.0
    %336 = vmatpush1.msra.mxu0 %v296
    %337 = vmatprep.subr.mxu0 0.0
    %338 = vmatpush1.msra.mxu0 %v297
    %339 = vmatprep.subr.mxu0 0.0
    %340 = vmatpush1.msra.mxu0 %v298
    %341 = vmatprep.subr.mxu0 0.0
    %342 = vmatpush1.msra.mxu0 %v299
    %343 = vmatprep.subr.mxu0 0.0
    %344 = vmatpush1.msra.mxu0 %v300
    %345 = vmatprep.subr.mxu0 0.0
    %346 = vmatpush1.msra.mxu0 %v301
    %347 = vmatprep.subr.mxu0 0.0
    %348 = vmatpush1.msra.mxu0 %v302
    %349 = vmatprep.subr.mxu0 0.0
    %350 = vmatpush1.msra.mxu0 %v303
    %351 = vmatprep.subr.mxu0 0.0
    %352 = vmatpush1.msra.mxu0 %v304
    %353 = vmatprep.subr.mxu0 0.0
    %354 = vmatpush1.msra.mxu0 %v305
    %355 = vmatprep.subr.mxu0 0.0
    %356 = vmatpush1.msra.mxu0 %v306
    %357 = vmatprep.subr.mxu0 0.0
    %358 = vmatpush1.msra.mxu0 %v307
    %359 = vmatprep.subr.mxu0 0.0
    %360 = vmatpush1.msra.mxu0 %v308
    %361 = vmatprep.subr.mxu0 0.0
    %362 = vmatpush1.msra.mxu0 %v309
    %363 = vmatprep.subr.mxu0 0.0
    %364 = vmatpush1.msra.mxu0 %v310
    %365 = vmatprep.subr.mxu0 0.0
    %366 = vmatpush1.msra.mxu0 %v311
    %367 = vmatprep.subr.mxu0 0.0
    %368 = vmatpush1.msra.mxu0 %v312
    %369 = vmatprep.subr.mxu0 0.0
    %370 = vmatpush1.msra.mxu0 %v313
    %371 = vmatprep.subr.mxu0 0.0
    %372 = vmatpush1.msra.mxu0 %v314
    %373 = vmatprep.subr.mxu0 0.0
    %374 = vmatpush1.msra.mxu0 %v315
    %375 = vmatprep.subr.mxu0 0.0
    %376 = vmatpush1.msra.mxu0 %v316
    %377 = vmatprep.subr.mxu0 0.0
    %378 = vmatpush1.msra.mxu0 %v317
    %379 = vmatprep.subr.mxu0 0.0
    %380 = vmatpush1.msra.mxu0 %v318
    %381 = vmatprep.subr.mxu0 0.0
    %382 = vmatpush1.msra.mxu0 %v319
    %383 = vmatprep.subr.mxu0 0.0
    %384 = vmatpush1.msra.mxu0 %v320
    %385 = vmatprep.subr.mxu0 0.0
    %386 = vmatpush1.msra.mxu0 %v321
    %387 = vmatprep.subr.mxu0 0.0
    %388 = vmatpush1.msra.mxu0 %v322
    %389 = vmatprep.subr.mxu0 0.0
    %390 = vmatpush1.msra.mxu0 %v323
    %391 = vmatprep.subr.mxu0 0.0
    %392 = vmatpush1.msra.mxu0 %v324
    %393 = vmatprep.subr.mxu0 0.0
    %394 = vmatpush1.msra.mxu0 %v325
    %395 = vmatprep.subr.mxu0 0.0
    %396 = vmatpush1.msra.mxu0 %v326
    %397 = vmatprep.subr.mxu0 0.0
    %398 = vmatpush1.msra.mxu0 %v327
    %399 = vmatprep.mubr.f32.mxu0 %v293
    %400 = vmatmul.mubr.f32.gmra.mrb[0].mxu0 %v292
    %v401 = vpop.f32.mrb[0].mxu0
    %v402 = vadd.f32 %v333, %v401
    %v403 = vpop.f32.mrb[0].mxu0
    %404 = vmatprep.mubr.f32.mxu0 %v295
    %405 = vmatmul.mubr.f32.gmra.mrb[0].mxu0 %v294
    %v406 = vpop.f32.mrb[0].mxu0
    %v407 = vadd.f32 %v333, %v406
    %v408 = vpop.f32.mrb[0].mxu0
    %409 = vdwg.mxu0
    %v410 = vmax.f32 %v402, 0.0
    %v411 = vmax.f32 %v407, 0.0
    %v412 = vld [vmem:[#allocation7] sm:$0xff]
    %v413 = vld [vmem:[#allocation7 + $0x8] sm:$0xff]
    %v414 = vld [vmem:[#allocation7 + $0x10] sm:$0xff]
    %v415 = vld [vmem:[#allocation7 + $0x18] sm:$0xff]
    %v416 = vld [vmem:[#allocation7 + $0x20] sm:$0xff]
    %v417 = vld [vmem:[#allocation7 + $0x28] sm:$0xff]
    %v418 = vld [vmem:[#allocation7 + $0x30] sm:$0xff]
    %v419 = vld [vmem:[#allocation7 + $0x38] sm:$0xff]
    %v420 = vld [vmem:[#allocation7 + $0x40] sm:$0xff]
    %v421 = vld [vmem:[#allocation7 + $0x48] sm:$0xff]
    %v422 = vld [vmem:[#allocation7 + $0x50] sm:$0xff]
    %v423 = vld [vmem:[#allocation7 + $0x58] sm:$0xff]
    %v424 = vld [vmem:[#allocation7 + $0x60] sm:$0xff]
    %v425 = vld [vmem:[#allocation7 + $0x68] sm:$0xff]
    %v426 = vld [vmem:[#allocation7 + $0x70] sm:$0xff]
    %v427 = vld [vmem:[#allocation7 + $0x78] sm:$0xff]
    %v428 = vld [vmem:[%s6] sm:$0x1]
    %v430 = vlaneseq
    %v431 = vshrl.u32 %v430, 7
    %v432 = vsub.s32 0, %v431
    %v433 = vrot.slane %v428, %v432
    %435 = vmatprep.subr.mxu0 0.0
    %436 = vmatpush1.msra.mxu0 %v412
    %437 = vmatprep.subr.mxu0 0.0
    %438 = vmatpush1.msra.mxu0 %v413
    %439 = vmatprep.subr.mxu0 0.0
    %440 = vmatpush1.msra.mxu0 %v414
    %441 = vmatprep.subr.mxu0 0.0
    %442 = vmatpush1.msra.mxu0 %v415
    %443 = vmatprep.subr.mxu0 0.0
    %444 = vmatpush1.msra.mxu0 %v416
    %445 = vmatprep.subr.mxu0 0.0
    %446 = vmatpush1.msra.mxu0 %v417
    %447 = vmatprep.subr.mxu0 0.0
    %448 = vmatpush1.msra.mxu0 %v418
    %449 = vmatprep.subr.mxu0 0.0
    %450 = vmatpush1.msra.mxu0 %v419
    %451 = vmatprep.subr.mxu0 0.0
    %452 = vmatpush1.msra.mxu0 %v420
    %453 = vmatprep.subr.mxu0 0.0
    %454 = vmatpush1.msra.mxu0 %v421
    %455 = vmatprep.subr.mxu0 0.0
    %456 = vmatpush1.msra.mxu0 %v422
    %457 = vmatprep.subr.mxu0 0.0
    %458 = vmatpush1.msra.mxu0 %v423
    %459 = vmatprep.subr.mxu0 0.0
    %460 = vmatpush1.msra.mxu0 %v424
    %461 = vmatprep.subr.mxu0 0.0
    %462 = vmatpush1.msra.mxu0 %v425
    %463 = vmatprep.subr.mxu0 0.0
    %464 = vmatpush1.msra.mxu0 %v426
    %465 = vmatprep.subr.mxu0 0.0
    %466 = vmatpush1.msra.mxu0 %v427
    %467 = vmatprep.subr.mxu0 0.0
    %468 = vmatpush1.msra.mxu0 0.0
    %469 = vmatprep.subr.mxu0 0.0
    %470 = vmatpush1.msra.mxu0 0.0
    %471 = vmatprep.subr.mxu0 0.0
    %472 = vmatpush1.msra.mxu0 0.0
    %473 = vmatprep.subr.mxu0 0.0
    %474 = vmatpush1.msra.mxu0 0.0
    %475 = vmatprep.subr.mxu0 0.0
    %476 = vmatpush1.msra.mxu0 0.0
    %477 = vmatprep.subr.mxu0 0.0
    %478 = vmatpush1.msra.mxu0 0.0
    %479 = vmatprep.subr.mxu0 0.0
    %480 = vmatpush1.msra.mxu0 0.0
    %481 = vmatprep.subr.mxu0 0.0
    %482 = vmatpush1.msra.mxu0 0.0
    %483 = vmatprep.subr.mxu0 0.0
    %484 = vmatpush1.msra.mxu0 0.0
    %485 = vmatprep.subr.mxu0 0.0
    %486 = vmatpush1.msra.mxu0 0.0
    %487 = vmatprep.subr.mxu0 0.0
    %488 = vmatpush1.msra.mxu0 0.0
    %489 = vmatprep.subr.mxu0 0.0
    %490 = vmatpush1.msra.mxu0 0.0
    %491 = vmatprep.subr.mxu0 0.0
    %492 = vmatpush1.msra.mxu0 0.0
    %493 = vmatprep.subr.mxu0 0.0
    %494 = vmatpush1.msra.mxu0 0.0
    %495 = vmatprep.subr.mxu0 0.0
    %496 = vmatpush1.msra.mxu0 0.0
    %497 = vmatprep.subr.mxu0 0.0
    %498 = vmatpush1.msra.mxu0 0.0
    %499 = vmatprep.mubr.f32.mxu0 0.0
    %500 = vmatmul.mubr.f32.gmra.mrb[0].mxu0 %v410
    %v501 = vpop.f32.mrb[0].mxu0
    %v502 = vadd.f32 %v433, %v501
    %v503 = vpop.f32.mrb[0].mxu0
    %504 = vmatprep.mubr.f32.mxu0 0.0
    %505 = vmatmul.mubr.f32.gmra.mrb[0].mxu0 %v411
    %v506 = vpop.f32.mrb[0].mxu0
    %v507 = vadd.f32 %v433, %v506
    %v508 = vpop.f32.mrb[0].mxu0
    %509 = vdwg.mxu0
    %v510 = vmax.f32 %v502, 0.0
    %v511 = vmax.f32 %v507, 0.0
    %v512 = vld [vmem:[#allocation8] sm:$0xff]
    %v513 = vld [vmem:[#allocation8 + $0x8] sm:$0xff]
    %v514 = vld [vmem:[#allocation8 + $0x10] sm:$0xff]
    %v515 = vld [vmem:[#allocation8 + $0x18] sm:$0xff]
    %v516 = vld [vmem:[#allocation8 + $0x20] sm:$0xff]
    %v517 = vld [vmem:[#allocation8 + $0x28] sm:$0xff]
    %v518 = vld [vmem:[#allocation8 + $0x30] sm:$0xff]
    %v519 = vld [vmem:[#allocation8 + $0x38] sm:$0xff]
    %v520 = vld [vmem:[#allocation8 + $0x40] sm:$0xff]
    %v521 = vld [vmem:[#allocation8 + $0x48] sm:$0xff]
    %v522 = vld [vmem:[#allocation8 + $0x50] sm:$0xff]
    %v523 = vld [vmem:[#allocation8 + $0x58] sm:$0xff]
    %v524 = vld [vmem:[#allocation8 + $0x60] sm:$0xff]
    %v525 = vld [vmem:[#allocation8 + $0x68] sm:$0xff]
    %v526 = vld [vmem:[#allocation8 + $0x70] sm:$0xff]
    %v527 = vld [vmem:[#allocation8 + $0x78] sm:$0xff]
    %v528 = vld [vmem:[%s8] sm:$0x1]
    %v530 = vlaneseq
    %v531 = vshrl.u32 %v530, 7
    %v532 = vsub.s32 0, %v531
    %v533 = vrot.slane %v528, %v532
    %535 = vmatprep.subr.mxu0 0.0
    %536 = vmatpush1.msra.mxu0 %v512
    %537 = vmatprep.subr.mxu0 0.0
    %538 = vmatpush1.msra.mxu0 %v513
    %539 = vmatprep.subr.mxu0 0.0
    %540 = vmatpush1.msra.mxu0 %v514
    %541 = vmatprep.subr.mxu0 0.0
    %542 = vmatpush1.msra.mxu0 %v515
    %543 = vmatprep.subr.mxu0 0.0
    %544 = vmatpush1.msra.mxu0 %v516
    %545 = vmatprep.subr.mxu0 0.0
    %546 = vmatpush1.msra.mxu0 %v517
    %547 = vmatprep.subr.mxu0 0.0
    %548 = vmatpush1.msra.mxu0 %v518
    %549 = vmatprep.subr.mxu0 0.0
    %550 = vmatpush1.msra.mxu0 %v519
    %551 = vmatprep.subr.mxu0 0.0
    %552 = vmatpush1.msra.mxu0 %v520
    %553 = vmatprep.subr.mxu0 0.0
    %554 = vmatpush1.msra.mxu0 %v521
    %555 = vmatprep.subr.mxu0 0.0
    %556 = vmatpush1.msra.mxu0 %v522
    %557 = vmatprep.subr.mxu0 0.0
    %558 = vmatpush1.msra.mxu0 %v523
    %559 = vmatprep.subr.mxu0 0.0
    %560 = vmatpush1.msra.mxu0 %v524
    %561 = vmatprep.subr.mxu0 0.0
    %562 = vmatpush1.msra.mxu0 %v525
    %563 = vmatprep.subr.mxu0 0.0
    %564 = vmatpush1.msra.mxu0 %v526
    %565 = vmatprep.subr.mxu0 0.0
    %566 = vmatpush1.msra.mxu0 %v527
    %567 = vmatprep.subr.mxu0 0.0
    %568 = vmatpush1.msra.mxu0 0.0
    %569 = vmatprep.subr.mxu0 0.0
    %570 = vmatpush1.msra.mxu0 0.0
    %571 = vmatprep.subr.mxu0 0.0
    %572 = vmatpush1.msra.mxu0 0.0
    %573 = vmatprep.subr.mxu0 0.0
    %574 = vmatpush1.msra.mxu0 0.0
    %575 = vmatprep.subr.mxu0 0.0
    %576 = vmatpush1.msra.mxu0 0.0
    %577 = vmatprep.subr.mxu0 0.0
    %578 = vmatpush1.msra.mxu0 0.0
    %579 = vmatprep.subr.mxu0 0.0
    %580 = vmatpush1.msra.mxu0 0.0
    %581 = vmatprep.subr.mxu0 0.0
    %582 = vmatpush1.msra.mxu0 0.0
    %583 = vmatprep.subr.mxu0 0.0
    %584 = vmatpush1.msra.mxu0 0.0
    %585 = vmatprep.subr.mxu0 0.0
    %586 = vmatpush1.msra.mxu0 0.0
    %587 = vmatprep.subr.mxu0 0.0
    %588 = vmatpush1.msra.mxu0 0.0
    %589 = vmatprep.subr.mxu0 0.0
    %590 = vmatpush1.msra.mxu0 0.0
    %591 = vmatprep.subr.mxu0 0.0
    %592 = vmatpush1.msra.mxu0 0.0
    %593 = vmatprep.subr.mxu0 0.0
    %594 = vmatpush1.msra.mxu0 0.0
    %595 = vmatprep.subr.mxu0 0.0
    %596 = vmatpush1.msra.mxu0 0.0
    %597 = vmatprep.subr.mxu0 0.0
    %598 = vmatpush1.msra.mxu0 0.0
    %599 = vmatprep.mubr.f32.mxu0 0.0
    %600 = vmatmul.mubr.f32.gmra.mrb[0].mxu0 %v510
    %v601 = vpop.f32.mrb[0].mxu0
    %v602 = vadd.f32 %v533, %v601
    %v603 = vpop.f32.mrb[0].mxu0
    %604 = vmatprep.mubr.f32.mxu0 0.0
    %605 = vmatmul.mubr.f32.gmra.mrb[0].mxu0 %v511
    %v606 = vpop.f32.mrb[0].mxu0
    %v607 = vadd.f32 %v533, %v606
    %v608 = vpop.f32.mrb[0].mxu0
    %609 = vdwg.mxu0
    %610 = vst [vmem:[#allocation17] sm:$0xff] %v602
    %611 = vst [vmem:[#allocation17 + $0x8] sm:$0xff] %v607
    %v612 = vld [vmem:[#allocation10] sm:$0xff]
    %v613 = vld [vmem:[#allocation10 + $0x8] sm:$0xff]
    %v614 = vld [vmem:[#allocation10 + $0x10] sm:$0xff]
    %v615 = vld [vmem:[#allocation10 + $0x18] sm:$0xff]
    %v616 = vld [vmem:[#allocation10 + $0x20] sm:$0xff]
    %v617 = vld [vmem:[#allocation10 + $0x28] sm:$0xff]
    %v618 = vld [vmem:[#allocation10 + $0x30] sm:$0xff]
    %v619 = vld [vmem:[#allocation10 + $0x38] sm:$0xff]
    %v620 = vld [vmem:[#allocation10 + $0x40] sm:$0xff]
    %v621 = vld [vmem:[#allocation10 + $0x48] sm:$0xff]
    %v622 = vld [vmem:[#allocation10 + $0x50] sm:$0xff]
    %v623 = vld [vmem:[#allocation10 + $0x58] sm:$0xff]
    %v624 = vld [vmem:[#allocation10 + $0x60] sm:$0xff]
    %v625 = vld [vmem:[#allocation10 + $0x68] sm:$0xff]
    %v626 = vld [vmem:[#allocation10 + $0x70] sm:$0xff]
    %v627 = vld [vmem:[#allocation10 + $0x78] sm:$0xff]
    %v628 = vld [vmem:[%s10] sm:$0x1]
    %v630 = vlaneseq
    %v631 = vshrl.u32 %v630, 7
    %v632 = vsub.s32 0, %v631
    %v633 = vrot.slane %v628, %v632
    %635 = vmatprep.subr.mxu0 0.0
    %636 = vmatpush1.msra.mxu0 %v612
    %637 = vmatprep.subr.mxu0 0.0
    %638 = vmatpush1.msra.mxu0 %v613
    %639 = vmatprep.subr.mxu0 0.0
    %640 = vmatpush1.msra.mxu0 %v614
    %641 = vmatprep.subr.mxu0 0.0
    %642 = vmatpush1.msra.mxu0 %v615
    %643 = vmatprep.subr.mxu0 0.0
    %644 = vmatpush1.msra.mxu0 %v616
    %645 = vmatprep.subr.mxu0 0.0
    %646 = vmatpush1.msra.mxu0 %v617
    %647 = vmatprep.subr.mxu0 0.0
    %648 = vmatpush1.msra.mxu0 %v618
    %649 = vmatprep.subr.mxu0 0.0
    %650 = vmatpush1.msra.mxu0 %v619
    %651 = vmatprep.subr.mxu0 0.0
    %652 = vmatpush1.msra.mxu0 %v620
    %653 = vmatprep.subr.mxu0 0.0
    %654 = vmatpush1.msra.mxu0 %v621
    %655 = vmatprep.subr.mxu0 0.0
    %656 = vmatpush1.msra.mxu0 %v622
    %657 = vmatprep.subr.mxu0 0.0
    %658 = vmatpush1.msra.mxu0 %v623
    %659 = vmatprep.subr.mxu0 0.0
    %660 = vmatpush1.msra.mxu0 %v624
    %661 = vmatprep.subr.mxu0 0.0
    %662 = vmatpush1.msra.mxu0 %v625
    %663 = vmatprep.subr.mxu0 0.0
    %664 = vmatpush1.msra.mxu0 %v626
    %665 = vmatprep.subr.mxu0 0.0
    %666 = vmatpush1.msra.mxu0 %v627
    %667 = vmatprep.subr.mxu0 0.0
    %668 = vmatpush1.msra.mxu0 0.0
    %669 = vmatprep.subr.mxu0 0.0
    %670 = vmatpush1.msra.mxu0 0.0
    %671 = vmatprep.subr.mxu0 0.0
    %672 = vmatpush1.msra.mxu0 0.0
    %673 = vmatprep.subr.mxu0 0.0
    %674 = vmatpush1.msra.mxu0 0.0
    %675 = vmatprep.subr.mxu0 0.0
    %676 = vmatpush1.msra.mxu0 0.0
    %677 = vmatprep.subr.mxu0 0.0
    %678 = vmatpush1.msra.mxu0 0.0
    %679 = vmatprep.subr.mxu0 0.0
    %680 = vmatpush1.msra.mxu0 0.0
    %681 = vmatprep.subr.mxu0 0.0
    %682 = vmatpush1.msra.mxu0 0.0
    %683 = vmatprep.subr.mxu0 0.0
    %684 = vmatpush1.msra.mxu0 0.0
    %685 = vmatprep.subr.mxu0 0.0
    %686 = vmatpush1.msra.mxu0 0.0
    %687 = vmatprep.subr.mxu0 0.0
    %688 = vmatpush1.msra.mxu0 0.0
    %689 = vmatprep.subr.mxu0 0.0
    %690 = vmatpush1.msra.mxu0 0.0
    %691 = vmatprep.subr.mxu0 0.0
    %692 = vmatpush1.msra.mxu0 0.0
    %693 = vmatprep.subr.mxu0 0.0
    %694 = vmatpush1.msra.mxu0 0.0
    %695 = vmatprep.subr.mxu0 0.0
    %696 = vmatpush1.msra.mxu0 0.0
    %697 = vmatprep.subr.mxu0 0.0
    %698 = vmatpush1.msra.mxu0 0.0
    %699 = vmatprep.mubr.f32.mxu0 0.0
    %700 = vmatmul.mubr.f32.gmra.mrb[0].mxu0 %v602
    %v701 = vpop.f32.mrb[0].mxu0
    %v702 = vadd.f32 %v633, %v701
    %v703 = vpop.f32.mrb[0].mxu0
    %704 = vmatprep.mubr.f32.mxu0 0.0
    %705 = vmatmul.mubr.f32.gmra.mrb[0].mxu0 %v607
    %v706 = vpop.f32.mrb[0].mxu0
    %v707 = vadd.f32 %v633, %v706
    %v708 = vpop.f32.mrb[0].mxu0
    %709 = vdwg.mxu0
    %v710 = vmax.f32 %v702, 0.0
    %v711 = vmax.f32 %v707, 0.0
    %v712 = vld [vmem:[#allocation11] sm:$0xff]
    %v713 = vld [vmem:[#allocation11 + $0x8] sm:$0xff]
    %v714 = vld [vmem:[#allocation11 + $0x10] sm:$0xff]
    %v715 = vld [vmem:[#allocation11 + $0x18] sm:$0xff]
    %v716 = vld [vmem:[#allocation11 + $0x20] sm:$0xff]
    %v717 = vld [vmem:[#allocation11 + $0x28] sm:$0xff]
    %v718 = vld [vmem:[#allocation11 + $0x30] sm:$0xff]
    %v719 = vld [vmem:[#allocation11 + $0x38] sm:$0xff]
    %v720 = vld [vmem:[#allocation11 + $0x40] sm:$0xff]
    %v721 = vld [vmem:[#allocation11 + $0x48] sm:$0xff]
    %v722 = vld [vmem:[#allocation11 + $0x50] sm:$0xff]
    %v723 = vld [vmem:[#allocation11 + $0x58] sm:$0xff]
    %v724 = vld [vmem:[#allocation11 + $0x60] sm:$0xff]
    %v725 = vld [vmem:[#allocation11 + $0x68] sm:$0xff]
    %v726 = vld [vmem:[#allocation11 + $0x70] sm:$0xff]
    %v727 = vld [vmem:[#allocation11 + $0x78] sm:$0xff]
    %v728 = vld [vmem:[%s12] sm:$0x1]
    %v730 = vlaneseq
    %v731 = vshrl.u32 %v730, 7
    %v732 = vsub.s32 0, %v731
    %v733 = vrot.slane %v728, %v732
    %735 = vmatprep.subr.mxu0 0.0
    %736 = vmatpush1.msra.mxu0 %v712
    %737 = vmatprep.subr.mxu0 0.0
    %738 = vmatpush1.msra.mxu0 %v713
    %739 = vmatprep.subr.mxu0 0.0
    %740 = vmatpush1.msra.mxu0 %v714
    %741 = vmatprep.subr.mxu0 0.0
    %742 = vmatpush1.msra.mxu0 %v715
    %743 = vmatprep.subr.mxu0 0.0
    %744 = vmatpush1.msra.mxu0 %v716
    %745 = vmatprep.subr.mxu0 0.0
    %746 = vmatpush1.msra.mxu0 %v717
    %747 = vmatprep.subr.mxu0 0.0
    %748 = vmatpush1.msra.mxu0 %v718
    %749 = vmatprep.subr.mxu0 0.0
    %750 = vmatpush1.msra.mxu0 %v719
    %751 = vmatprep.subr.mxu0 0.0
    %752 = vmatpush1.msra.mxu0 %v720
    %753 = vmatprep.subr.mxu0 0.0
    %754 = vmatpush1.msra.mxu0 %v721
    %755 = vmatprep.subr.mxu0 0.0
    %756 = vmatpush1.msra.mxu0 %v722
    %757 = vmatprep.subr.mxu0 0.0
    %758 = vmatpush1.msra.mxu0 %v723
    %759 = vmatprep.subr.mxu0 0.0
    %760 = vmatpush1.msra.mxu0 %v724
    %761 = vmatprep.subr.mxu0 0.0
    %762 = vmatpush1.msra.mxu0 %v725
    %763 = vmatprep.subr.mxu0 0.0
    %764 = vmatpush1.msra.mxu0 %v726
    %765 = vmatprep.subr.mxu0 0.0
    %766 = vmatpush1.msra.mxu0 %v727
    %767 = vmatprep.subr.mxu0 0.0
    %768 = vmatpush1.msra.mxu0 0.0
    %769 = vmatprep.subr.mxu0 0.0
    %770 = vmatpush1.msra.mxu0 0.0
    %771 = vmatprep.subr.mxu0 0.0
    %772 = vmatpush1.msra.mxu0 0.0
    %773 = vmatprep.subr.mxu0 0.0
    %774 = vmatpush1.msra.mxu0 0.0
    %775 = vmatprep.subr.mxu0 0.0
    %776 = vmatpush1.msra.mxu0 0.0
    %777 = vmatprep.subr.mxu0 0.0
    %778 = vmatpush1.msra.mxu0 0.0
    %779 = vmatprep.subr.mxu0 0.0
    %780 = vmatpush1.msra.mxu0 0.0
    %781 = vmatprep.subr.mxu0 0.0
    %782 = vmatpush1.msra.mxu0 0.0
    %783 = vmatprep.subr.mxu0 0.0
    %784 = vmatpush1.msra.mxu0 0.0
    %785 = vmatprep.subr.mxu0 0.0
    %786 = vmatpush1.msra.mxu0 0.0
    %787 = vmatprep.subr.mxu0 0.0
    %788 = vmatpush1.msra.mxu0 0.0
    %789 = vmatprep.subr.mxu0 0.0
    %790 = vmatpush1.msra.mxu0 0.0
    %791 = vmatprep.subr.mxu0 0.0
    %792 = vmatpush1.msra.mxu0 0.0
    %793 = vmatprep.subr.mxu0 0.0
    %794 = vmatpush1.msra.mxu0 0.0
    %795 = vmatprep.subr.mxu0 0.0
    %796 = vmatpush1.msra.mxu0 0.0
    %797 = vmatprep.subr.mxu0 0.0
    %798 = vmatpush1.msra.mxu0 0.0
    %799 = vmatprep.mubr.f32.mxu0 0.0
    %800 = vmatmul.mubr.f32.gmra.mrb[0].mxu0 %v710
    %v801 = vpop.f32.mrb[0].mxu0
    %v802 = vadd.f32 %v733, %v801
    %v803 = vpop.f32.mrb[0].mxu0
    %804 = vmatprep.mubr.f32.mxu0 0.0
    %805 = vmatmul.mubr.f32.gmra.mrb[0].mxu0 %v711
    %v806 = vpop.f32.mrb[0].mxu0
    %v807 = vadd.f32 %v733, %v806
    %v808 = vpop.f32.mrb[0].mxu0
    %809 = vdwg.mxu0
    %v810 = vmax.f32 %v802, 0.0
    %v811 = vmax.f32 %v807, 0.0
    %v812 = vld [vmem:[#allocation13] sm:$0xff]
    %v813 = vld [vmem:[#allocation13 + $0x8] sm:$0xff]
    %v814 = vld [vmem:[#allocation13 + $0x10] sm:$0xff]
    %v815 = vld [vmem:[#allocation13 + $0x18] sm:$0xff]
    %v816 = vld [vmem:[#allocation13 + $0x20] sm:$0xff]
    %v817 = vld [vmem:[#allocation13 + $0x28] sm:$0xff]
    %v818 = vld [vmem:[#allocation13 + $0x30] sm:$0xff]
    %v819 = vld [vmem:[#allocation13 + $0x38] sm:$0xff]
    %v820 = vld [vmem:[#allocation13 + $0x40] sm:$0xff]
    %v821 = vld [vmem:[#allocation13 + $0x48] sm:$0xff]
    %v822 = vld [vmem:[#allocation13 + $0x50] sm:$0xff]
    %v823 = vld [vmem:[#allocation13 + $0x58] sm:$0xff]
    %v824 = vld [vmem:[#allocation13 + $0x60] sm:$0xff]
    %v825 = vld [vmem:[#allocation13 + $0x68] sm:$0xff]
    %v826 = vld [vmem:[#allocation13 + $0x70] sm:$0xff]
    %v827 = vld [vmem:[#allocation13 + $0x78] sm:$0xff]
    %v828 = vld [vmem:[#allocation13 + $0x80] sm:$0xff]
    %v829 = vld [vmem:[#allocation13 + $0x88] sm:$0xff]
    %v830 = vld [vmem:[#allocation13 + $0x90] sm:$0xff]
    %v831 = vld [vmem:[#allocation13 + $0x98] sm:$0xff]
    %v832 = vld [vmem:[#allocation13 + $0xa0] sm:$0xff]
    %v833 = vld [vmem:[#allocation13 + $0xa8] sm:$0xff]
    %v834 = vld [vmem:[#allocation13 + $0xb0] sm:$0xff]
    %v835 = vld [vmem:[#allocation13 + $0xb8] sm:$0xff]
    %v836 = vld [vmem:[#allocation13 + $0xc0] sm:$0xff]
    %v837 = vld [vmem:[#allocation13 + $0xc8] sm:$0xff]
    %v838 = vld [vmem:[#allocation13 + $0xd0] sm:$0xff]
    %v839 = vld [vmem:[#allocation13 + $0xd8] sm:$0xff]
    %v840 = vld [vmem:[#allocation13 + $0xe0] sm:$0xff]
    %v841 = vld [vmem:[#allocation13 + $0xe8] sm:$0xff]
    %v842 = vld [vmem:[#allocation13 + $0xf0] sm:$0xff]
    %v843 = vld [vmem:[#allocation13 + $0xf8] sm:$0xff]
    %v844 = vld [vmem:[%s14] sm:$0x3]
    %v846 = vlaneseq
    %v847 = vshrl.u32 %v846, 7
    %v848 = vsub.s32 0, %v847
    %v849 = vrot.slane %v844, %v848
    %v850 = vlaneseq
    %v851 = vshrl.u32 %v850, 7
    %v852 = vsub.s32 1, %v851
    %v853 = vrot.slane %v844, %v852
    %856 = vmatprep.subr.mxu0 %v813
    %857 = vmatpush1.msra.mxu0 %v812
    %858 = vmatprep.subr.mxu0 %v815
    %859 = vmatpush1.msra.mxu0 %v814
    %860 = vmatprep.subr.mxu0 %v817
    %861 = vmatpush1.msra.mxu0 %v816
    %862 = vmatprep.subr.mxu0 %v819
    %863 = vmatpush1.msra.mxu0 %v818
    %864 = vmatprep.subr.mxu0 %v821
    %865 = vmatpush1.msra.mxu0 %v820
    %866 = vmatprep.subr.mxu0 %v823
    %867 = vmatpush1.msra.mxu0 %v822
    %868 = vmatprep.subr.mxu0 %v825
    %869 = vmatpush1.msra.mxu0 %v824
    %870 = vmatprep.subr.mxu0 %v827
    %871 = vmatpush1.msra.mxu0 %v826
    %872 = vmatprep.subr.mxu0 %v829
    %873 = vmatpush1.msra.mxu0 %v828
    %874 = vmatprep.subr.mxu0 %v831
    %875 = vmatpush1.msra.mxu0 %v830
    %876 = vmatprep.subr.mxu0 %v833
    %877 = vmatpush1.msra.mxu0 %v832
    %878 = vmatprep.subr.mxu0 %v835
    %879 = vmatpush1.msra.mxu0 %v834
    %880 = vmatprep.subr.mxu0 %v837
    %881 = vmatpush1.msra.mxu0 %v836
    %882 = vmatprep.subr.mxu0 %v839
    %883 = vmatpush1.msra.mxu0 %v838
    %884 = vmatprep.subr.mxu0 %v841
    %885 = vmatpush1.msra.mxu0 %v840
    %886 = vmatprep.subr.mxu0 %v843
    %887 = vmatpush1.msra.mxu0 %v842
    %888 = vmatprep.subr.mxu0 0.0
    %889 = vmatpush1.msra.mxu0 0.0
    %890 = vmatprep.subr.mxu0 0.0
    %891 = vmatpush1.msra.mxu0 0.0
    %892 = vmatprep.subr.mxu0 0.0
    %893 = vmatpush1.msra.mxu0 0.0
    %894 = vmatprep.subr.mxu0 0.0
    %895 = vmatpush1.msra.mxu0 0.0
    %896 = vmatprep.subr.mxu0 0.0
    %897 = vmatpush1.msra.mxu0 0.0
    %898 = vmatprep.subr.mxu0 0.0
    %899 = vmatpush1.msra.mxu0 0.0
    %900 = vmatprep.subr.mxu0 0.0
    %901 = vmatpush1.msra.mxu0 0.0
    %902 = vmatprep.subr.mxu0 0.0
    %903 = vmatpush1.msra.mxu0 0.0
    %904 = vmatprep.subr.mxu0 0.0
    %905 = vmatpush1.msra.mxu0 0.0
    %906 = vmatprep.subr.mxu0 0.0
    %907 = vmatpush1.msra.mxu0 0.0
    %908 = vmatprep.subr.mxu0 0.0
    %909 = vmatpush1.msra.mxu0 0.0
    %910 = vmatprep.subr.mxu0 0.0
    %911 = vmatpush1.msra.mxu0 0.0
    %912 = vmatprep.subr.mxu0 0.0
    %913 = vmatpush1.msra.mxu0 0.0
    %914 = vmatprep.subr.mxu0 0.0
    %915 = vmatpush1.msra.mxu0 0.0
    %916 = vmatprep.subr.mxu0 0.0
    %917 = vmatpush1.msra.mxu0 0.0
    %918 = vmatprep.subr.mxu0 0.0
    %919 = vmatpush1.msra.mxu0 0.0
    %920 = vmatprep.mubr.f32.mxu0 0.0
    %921 = vmatmul.mubr.f32.gmra.mrb[0].mxu0 %v810
    %v922 = vpop.f32.mrb[0].mxu0
    %v923 = vadd.f32 %v849, %v922
    %v924 = vpop.f32.mrb[0].mxu0
    %v925 = vadd.f32 %v853, %v924
    %926 = vmatprep.mubr.f32.mxu0 0.0
    %927 = vmatmul.mubr.f32.gmra.mrb[0].mxu0 %v811
    %v928 = vpop.f32.mrb[0].mxu0
    %v929 = vadd.f32 %v849, %v928
    %v930 = vpop.f32.mrb[0].mxu0
    %v931 = vadd.f32 %v853, %v930
    %932 = vdwg.mxu0
    %v933 = vmax.f32 %v923, 0.0
    %v934 = vmax.f32 %v925, 0.0
    %v935 = vmax.f32 %v929, 0.0
    %v936 = vmax.f32 %v931, 0.0
    %v937 = vld [vmem:[#allocation14] sm:$0xff]
    %v938 = vld [vmem:[#allocation14 + $0x8] sm:$0xff]
    %v939 = vld [vmem:[#allocation14 + $0x10] sm:$0xff]
    %v940 = vld [vmem:[#allocation14 + $0x18] sm:$0xff]
    %v941 = vld [vmem:[#allocation14 + $0x20] sm:$0xff]
    %v942 = vld [vmem:[#allocation14 + $0x28] sm:$0xff]
    %v943 = vld [vmem:[#allocation14 + $0x30] sm:$0xff]
    %v944 = vld [vmem:[#allocation14 + $0x38] sm:$0xff]
    %v945 = vld [vmem:[#allocation14 + $0x40] sm:$0xff]
    %v946 = vld [vmem:[#allocation14 + $0x48] sm:$0xff]
    %v947 = vld [vmem:[#allocation14 + $0x50] sm:$0xff]
    %v948 = vld [vmem:[#allocation14 + $0x58] sm:$0xff]
    %v949 = vld [vmem:[#allocation14 + $0x60] sm:$0xff]
    %v950 = vld [vmem:[#allocation14 + $0x68] sm:$0xff]
    %v951 = vld [vmem:[#allocation14 + $0x70] sm:$0xff]
    %v952 = vld [vmem:[#allocation14 + $0x78] sm:$0xff]
    %v953 = vld [vmem:[#allocation14 + $0x80] sm:$0xff]
    %v954 = vld [vmem:[#allocation14 + $0x88] sm:$0xff]
    %v955 = vld [vmem:[#allocation14 + $0x90] sm:$0xff]
    %v956 = vld [vmem:[#allocation14 + $0x98] sm:$0xff]
    %v957 = vld [vmem:[#allocation14 + $0xa0] sm:$0xff]
    %v958 = vld [vmem:[#allocation14 + $0xa8] sm:$0xff]
    %v959 = vld [vmem:[#allocation14 + $0xb0] sm:$0xff]
    %v960 = vld [vmem:[#allocation14 + $0xb8] sm:$0xff]
    %v961 = vld [vmem:[#allocation14 + $0xc0] sm:$0xff]
    %v962 = vld [vmem:[#allocation14 + $0xc8] sm:$0xff]
    %v963 = vld [vmem:[#allocation14 + $0xd0] sm:$0xff]
    %v964 = vld [vmem:[#allocation14 + $0xd8] sm:$0xff]
    %v965 = vld [vmem:[#allocation14 + $0xe0] sm:$0xff]
    %v966 = vld [vmem:[#allocation14 + $0xe8] sm:$0xff]
    %v967 = vld [vmem:[#allocation14 + $0xf0] sm:$0xff]
    %v968 = vld [vmem:[#allocation14 + $0xf8] sm:$0xff]
    %v969 = vld [vmem:[%s16] sm:$0x1]
    %v971 = vlaneseq
    %v972 = vshrl.u32 %v971, 7
    %v973 = vsub.s32 0, %v972
    %v974 = vrot.slane %v969, %v973
    %976 = vmatprep.subr.mxu0 0.0
    %977 = vmatpush1.msra.mxu0 %v937
    %978 = vmatprep.subr.mxu0 0.0
    %979 = vmatpush1.msra.mxu0 %v938
    %980 = vmatprep.subr.mxu0 0.0
    %981 = vmatpush1.msra.mxu0 %v939
    %982 = vmatprep.subr.mxu0 0.0
    %983 = vmatpush1.msra.mxu0 %v940
    %984 = vmatprep.subr.mxu0 0.0
    %985 = vmatpush1.msra.mxu0 %v941
    %986 = vmatprep.subr.mxu0 0.0
    %987 = vmatpush1.msra.mxu0 %v942
    %988 = vmatprep.subr.mxu0 0.0
    %989 = vmatpush1.msra.mxu0 %v943
    %990 = vmatprep.subr.mxu0 0.0
    %991 = vmatpush1.msra.mxu0 %v944
    %992 = vmatprep.subr.mxu0 0.0
    %993 = vmatpush1.msra.mxu0 %v945
    %994 = vmatprep.subr.mxu0 0.0
    %995 = vmatpush1.msra.mxu0 %v946
    %996 = vmatprep.subr.mxu0 0.0
    %997 = vmatpush1.msra.mxu0 %v947
    %998 = vmatprep.subr.mxu0 0.0
    %999 = vmatpush1.msra.mxu0 %v948
    %1000 = vmatprep.subr.mxu0 0.0
    %1001 = vmatpush1.msra.mxu0 %v949
    %1002 = vmatprep.subr.mxu0 0.0
    %1003 = vmatpush1.msra.mxu0 %v950
    %1004 = vmatprep.subr.mxu0 0.0
    %1005 = vmatpush1.msra.mxu0 %v951
    %1006 = vmatprep.subr.mxu0 0.0
    %1007 = vmatpush1.msra.mxu0 %v952
    %1008 = vmatprep.subr.mxu0 0.0
    %1009 = vmatpush1.msra.mxu0 %v953
    %1010 = vmatprep.subr.mxu0 0.0
    %1011 = vmatpush1.msra.mxu0 %v954
    %1012 = vmatprep.subr.mxu0 0.0
    %1013 = vmatpush1.msra.mxu0 %v955
    %1014 = vmatprep.subr.mxu0 0.0
    %1015 = vmatpush1.msra.mxu0 %v956
    %1016 = vmatprep.subr.mxu0 0.0
    %1017 = vmatpush1.msra.mxu0 %v957
    %1018 = vmatprep.subr.mxu0 0.0
    %1019 = vmatpush1.msra.mxu0 %v958
    %1020 = vmatprep.subr.mxu0 0.0
    %1021 = vmatpush1.msra.mxu0 %v959
    %1022 = vmatprep.subr.mxu0 0.0
    %1023 = vmatpush1.msra.mxu0 %v960
    %1024 = vmatprep.subr.mxu0 0.0
    %1025 = vmatpush1.msra.mxu0 %v961
    %1026 = vmatprep.subr.mxu0 0.0
    %1027 = vmatpush1.msra.mxu0 %v962
    %1028 = vmatprep.subr.mxu0 0.0
    %1029 = vmatpush1.msra.mxu0 %v963
    %1030 = vmatprep.subr.mxu0 0.0
    %1031 = vmatpush1.msra.mxu0 %v964
    %1032 = vmatprep.subr.mxu0 0.0
    %1033 = vmatpush1.msra.mxu0 %v965
    %1034 = vmatprep.subr.mxu0 0.0
    %1035 = vmatpush1.msra.mxu0 %v966
    %1036 = vmatprep.subr.mxu0 0.0
    %1037 = vmatpush1.msra.mxu0 %v967
    %1038 = vmatprep.subr.mxu0 0.0
    %1039 = vmatpush1.msra.mxu0 %v968
    %1040 = vmatprep.mubr.f32.mxu0 %v934
    %1041 = vmatmul.mubr.f32.gmra.mrb[0].mxu0 %v933
    %v1042 = vpop.f32.mrb[0].mxu0
    %v1043 = vadd.f32 %v974, %v1042
    %v1044 = vpop.f32.mrb[0].mxu0
    %1045 = vmatprep.mubr.f32.mxu0 %v936
    %1046 = vmatmul.mubr.f32.gmra.mrb[0].mxu0 %v935
    %v1047 = vpop.f32.mrb[0].mxu0
    %v1048 = vadd.f32 %v974, %v1047
    %v1049 = vpop.f32.mrb[0].mxu0
    %1050 = vdwg.mxu0
    %1051 = vst [vmem:[#allocation16] sm:$0xff] %v1043
    %1052 = vst [vmem:[#allocation16 + $0x8] sm:$0xff] %v1048
    // Predicated region
    $region102: #{weather_autoencoder_forward.1} parent=1 // pred_check
      _
    $region103: #{weather_autoencoder_forward.1} parent=1 // pred_check_branch
      %1054 = sbr.rel (0) target = $region105
    $region104: #{weather_autoencoder_forward.1} parent=1 // pred_region
      %s1056 = ssub.s32 256, 256
      %1057 = vsyncadd [#allocation4], %s1056
      %s1058 = sshll.u32 [#allocation16], 4
      %s1059 = int_to_ptr.vmem [resolvable:$true] %s1058
      %1064 = dma.vmem_to_hbm [thread:$0]  %s1059, 256, %s17, [#allocation4], 128, 128, 8
    $region105: #{weather_autoencoder_forward.1} parent=1 // pred_fallthru
      _
    // Predicated region
    $region106: #{weather_autoencoder_forward.1} parent=1 // pred_check
      _
    $region107: #{weather_autoencoder_forward.1} parent=1 // pred_check_branch
      %1066 = sbr.rel (0) target = $region109
    $region108: #{weather_autoencoder_forward.1} parent=1 // pred_region
      %s1068 = ssub.s32 256, 256
      %1069 = vsyncadd [#allocation18], %s1068
      %s1070 = sshll.u32 [#allocation17], 4
      %s1071 = int_to_ptr.vmem [resolvable:$true] %s1070
      %1076 = dma.vmem_to_hbm [thread:$0]  %s1071, 256, %s18, [#allocation18], 128, 128, 8
    $region109: #{weather_autoencoder_forward.1} parent=1 // pred_fallthru
      _
    // Predicated region
    $region110: #{weather_autoencoder_forward.1} parent=1 // pred_check
      _
    $region111: #{weather_autoencoder_forward.1} parent=1 // pred_check_branch
      %1078 = sbr.rel (0) target = $region113
    $region112: #{weather_autoencoder_forward.1} parent=1 // pred_region
      %1079 = dma.done [#allocation4], 256
    $region113: #{weather_autoencoder_forward.1} parent=1 // pred_fallthru
      _
    // Predicated region
    $region114: #{weather_autoencoder_forward.1} parent=1 // pred_check
      _
    $region115: #{weather_autoencoder_forward.1} parent=1 // pred_check_branch
      %1081 = sbr.rel (0) target = $region117
    $region116: #{weather_autoencoder_forward.1} parent=1 // pred_region
      %1082 = dma.done [#allocation18], 256
    $region117: #{weather_autoencoder_forward.1} parent=1 // pred_fallthru
      _
    %1083 = vsyncpa [#allocation3], 1
    %1084 = vsyncpa [#allocation6], 1
    %1085 = vsyncpa [#allocation9], 1
    %1086 = vsyncpa [#allocation12], 1
    %1087 = vsyncpa [#allocation15], 1
    %1088 = vsyncpa [#allocation4], 1
    %1089 = vsyncpa [#allocation18], 1

</llo_original>
